<compile_context>
chip_gen: v5e
topology: v5e:2x2
jax: 0.10.0
libtpu: 0.0.40
codegen_flags: <defaults>
</compile_context>

<pallas_src>
import functools

import numpy as np

import jax
import jax.numpy as jnp
from jax.experimental import pallas as pl
from jax.experimental.pallas import tpu as pltpu

# ---- module hyper-parameters (ConvBlock(in_channels, out_channels, ...)) ----
IN_CHANNELS = 4
OUT_CHANNELS = 8
DIM = 3                       # SplineConv(dim=3)
KERNEL_SIZE = 4               # SplineConv(kernel_size=4)
DEGREE = 1                    # SplineConv default degree
K_TOTAL = KERNEL_SIZE ** DIM  # 64 weight matrices
BN_EPS = 1e-5

assert KERNEL_SIZE & (KERNEL_SIZE - 1) == 0, "kernel_size must be a power of two here"
_KS_SHIFT = KERNEL_SIZE.bit_length() - 1      # log2(KERNEL_SIZE)
_KS_MASK = KERNEL_SIZE - 1


def _round_up(x, m):
    return (x + m - 1) // m * m


def conv_block_kernel(win_ref, xj_ref, attr_ref, dst_ref, invdeg_ref, root_ref,
                      wsp_ref, gamma_ref, beta_ref, o_ref, acc_ref, *, window_w):
    step = pl.program_id(0)
    tile_e, c_in = xj_ref.shape
    n_nodes, c_out = o_ref.shape
    lanes = c_in * K_TOTAL

    @pl.when(step == 0)
    def _init():
        acc_ref[...] = jnp.zeros_like(acc_ref)

    # ---- degree-1 open B-spline basis (tensor product over DIM pseudo-coord dims),
    #      built directly in the (C_in*K_TOTAL)=256-lane weight space with x_j
    #      folded in, so ONE MXU pass produces the per-edge message ----
    attr = jnp.clip(attr_ref[...], 0.0, 1.0)                 # (tE, DIM), defensive clamp
    v = attr * jnp.float32(KERNEL_SIZE - DEGREE)
    fl = jnp.floor(v)
    frac = v - fl                                            # (tE, DIM)
    fli = fl.astype(jnp.int32)

    # step-invariant lane decomposition (constant-folded): lane = c*64 + k
    lane = jax.lax.broadcasted_iota(jnp.int32, (1, lanes), 1)
    c_lane = lane >> (DIM * _KS_SHIFT)                       # input-channel index
    k_lane = lane & (K_TOTAL - 1)                            # flat spline-weight index

    xj = xj_ref[...]                                         # (tE, C_in)
    coeff = jnp.zeros((tile_e, lanes), jnp.float32)
    for c in range(c_in):                                    # x_j folded into the basis
        coeff = jnp.where(c_lane == c, xj[:, c:c + 1], coeff)
    for d in range(DIM):
        kd = (k_lane >> (d * _KS_SHIFT)) & _KS_MASK          # digit d of k (base-4)
        lo = fli[:, d:d + 1]
        fd = frac[:, d:d + 1]
        hi = lo + 1
        hi = jnp.where(hi >= KERNEL_SIZE, hi - KERNEL_SIZE, hi)  # open spline: frac==0 there
        b_d = jnp.where(kd == lo, 1.0 - fd, 0.0) + jnp.where(kd == hi, fd, 0.0)
        coeff = coeff * b_d                                  # (tE, 256)

    # single bf16 MXU pass, K = 256 (f32 accumulate)
    msg = jnp.dot(coeff.astype(jnp.bfloat16), wsp_ref[...],
                  preferred_element_type=jnp.float32)        # (tE, C_out)

    # ---- windowed scatter-sum: edges are dst-sorted, so this tile only touches
    #      node rows [w0, w0 + window_w) of the accumulator ----
    w0 = pl.multiple_of(win_ref[step], 8)
    rows = w0 + jax.lax.broadcasted_iota(jnp.int32, (window_w, tile_e), 0)
    oh = (rows == dst_ref[...]).astype(jnp.float32)          # padded edges (dst=-1): zero col
    partial = jnp.dot(oh, msg, preferred_element_type=jnp.float32)   # (W, C_out)
    acc_ref[pl.ds(w0, window_w), :] = acc_ref[pl.ds(w0, window_w), :] + partial

    # ---- finalize on the last edge tile: mean, root weight/bias, ELU, BatchNorm ----
    @pl.when(step == pl.num_programs(0) - 1)
    def _finalize():
        agg = acc_ref[...][:n_nodes]                          # drop sublane padding rows
        out = agg * invdeg_ref[...] + root_ref[...]           # exact mean + (x@W_root + b)
        # ELU(alpha=1); clamp so the unselected exp branch cannot overflow.
        out = jnp.where(out > 0.0, out, jnp.exp(jnp.minimum(out, 0.0)) - 1.0)
        # BatchNorm, training-mode batch stats (biased variance) over ALL nodes —
        # stays global because the full (N, C_out) result is resident in the accumulator.
        mean = jnp.mean(out, axis=0, keepdims=True)
        var = jnp.mean(jnp.square(out - mean), axis=0, keepdims=True)
        out = (out - mean) * jax.lax.rsqrt(var + jnp.float32(BN_EPS))
        o_ref[...] = out * gamma_ref[...] + beta_ref[...]


def _vmem_limit_bytes(n_nodes, n_acc, tile_e, window_w, c_in, c_out):
    lanes = c_in * K_TOTAL
    tiled = 2 * 2 * tile_e * (c_in + DIM + 1) * 4             # double-buffered edge tiles
    resident = (n_nodes * (1 + c_out) * 4 + lanes * c_out * 2
                + 2 * c_out * 4 + 2 * n_nodes * c_out * 4)
    scratch = n_acc * c_out * 4
    temps = (tile_e * lanes * (4 + 2)                         # coeff f32 + bf16 copy
             + window_w * tile_e * 8                          # windowed one-hot + row iota
             + tile_e * c_out * 4)
    est = tiled + resident + scratch + temps
    try:
        cap = int(getattr(pltpu.get_tpu_info(), "vmem_capacity_bytes", 0)) or 64 * 2**20
    except Exception:                                         # pragma: no cover
        cap = 64 * 2**20                                      # conservative (v7x physical)
    # 2x headroom, floor 16 MiB, cap at 75% of the generation's physical VMEM.
    return int(min(max(2 * est, 16 * 2**20), int(0.75 * cap)))


@functools.partial(jax.jit, static_argnames=("n_nodes", "n_acc", "window_w", "tile_e"))
def _conv_block_pallas(win_starts, x_j, attr, dst_p, inv_deg, root, w_flat, gamma, beta,
                       *, n_nodes, n_acc, window_w, tile_e):
    e_pad, c_in = x_j.shape
    c_out = root.shape[1]
    lanes = c_in * K_TOTAL
    n_tiles = e_pad // tile_e

    kernel = functools.partial(conv_block_kernel, window_w=window_w)

    grid_spec = pltpu.PrefetchScalarGridSpec(
        num_scalar_prefetch=1,                                # per-tile window starts (SMEM)
        grid=(n_tiles,),
        in_specs=[
            pl.BlockSpec((tile_e, c_in), lambda e, w: (e, 0)),     # x_j    (edge-tiled)
            pl.BlockSpec((tile_e, DIM), lambda e, w: (e, 0)),      # attr   (edge-tiled)
            pl.BlockSpec((1, tile_e), lambda e, w: (0, e)),        # dst    (edge-tiled)
            pl.BlockSpec((n_nodes, 1), lambda e, w: (0, 0)),       # 1/deg  (resident)
            pl.BlockSpec((n_nodes, c_out), lambda e, w: (0, 0)),   # x@Wroot+bias (resident)
            pl.BlockSpec((lanes, c_out), lambda e, w: (0, 0)),     # spline weights (resident)
            pl.BlockSpec((1, c_out), lambda e, w: (0, 0)),         # gamma
            pl.BlockSpec((1, c_out), lambda e, w: (0, 0)),         # beta
        ],
        out_specs=pl.BlockSpec((n_nodes, c_out), lambda e, w: (0, 0)),
        scratch_shapes=[pltpu.VMEM((n_acc, c_out), jnp.float32)],  # resident accumulator
    )

    flops = (2 * e_pad * lanes * c_out            # fused spline matmul
             + 2 * window_w * e_pad * c_out       # windowed scatter matmuls
             + 20 * e_pad * lanes                 # basis build (VPU)
             + 4 * n_nodes * c_out)               # finalize
    bytes_accessed = (4 * (x_j.size + attr.size + dst_p.size + inv_deg.size
                           + root.size + 2 * c_out + n_nodes * c_out)
                      + 2 * w_flat.size + 4 * win_starts.size)

    return pl.pallas_call(
        kernel,
        out_shape=jax.ShapeDtypeStruct((n_nodes, c_out), jnp.float32),
        grid_spec=grid_spec,
        compiler_params=pltpu.CompilerParams(
            dimension_semantics=("arbitrary",),   # edge axis accumulates into scratch
            vmem_limit_bytes=_vmem_limit_bytes(n_nodes, n_acc, tile_e, window_w,
                                               c_in, c_out)),
        cost_estimate=pl.CostEstimate(
            flops=flops,
            transcendentals=n_nodes * c_out + c_out,
            bytes_accessed=bytes_accessed),
    )(win_starts, x_j, attr, dst_p, inv_deg, root, w_flat, gamma, beta)


def conv_block_forward(x, edge_index, edge_attr, w_spline, w_root, bias, gamma,
                       beta, *, tile_e=2048):
    """SplineConv(dim=3, kernel_size=4, aggr='mean') -> ELU -> BatchNorm.

    `w_spline` uses the PyG-native (K_TOTAL, C_in, C_out) layout.
    Edges are sorted by destination (host-side preprocessing) so the scatter
    only touches a narrow node window per edge tile.
    """
    n_nodes, c_in = x.shape
    c_out = w_root.shape[1]
    n_edges = edge_index.shape[1]
    n_acc = _round_up(n_nodes, 8)

    src = edge_index[0].astype(jnp.int32)
    dst = edge_index[1].astype(jnp.int32)

    # Sort edges by destination -> each edge tile covers a contiguous node window.
    order = jnp.argsort(dst)
    src = jnp.take(src, order)
    dst = jnp.take(dst, order)
    attr = jnp.take(edge_attr.astype(jnp.float32), order, axis=0)

    tile_e = max(128, min(tile_e, _round_up(n_edges, 128)))
    e_pad = _round_up(n_edges, tile_e)
    n_tiles = e_pad // tile_e
    pad = e_pad - n_edges

    # Per-tile node-window starts (multiple of 8) + static window width.
    # (Data-dependent, so window_w is a compile-time constant per graph batch.)
    dst_host = np.asarray(jax.device_get(dst))
    win_starts = np.zeros((n_tiles,), np.int32)
    span = 8
    for t in range(n_tiles):
        lo_e = t * tile_e
        hi_e = min(lo_e + tile_e, n_edges)
        if lo_e >= n_edges:
            continue
        w0 = (int(dst_host[lo_e]) // 8) * 8
        win_starts[t] = w0
        span = max(span, int(dst_host[hi_e - 1]) - w0 + 1)
    window_w = min(_round_up(span, 8), n_acc)
    win_starts = np.minimum(win_starts, n_acc - window_w).astype(np.int32)

    x = x.astype(jnp.float32)
    # Wrapper-side row gather of source-node features (cheap XLA gather); the
    # gathered rows stream edge-tiled through the kernel pipeline.
    x_j = jnp.pad(jnp.take(x, src, axis=0), ((0, pad), (0, 0)))
    attr = jnp.pad(attr, ((0, pad), (0, 0)))
    # Padded edges get dst = -1 -> their one-hot column is all zero.
    dst_p = jnp.pad(dst, (0, pad), constant_values=-1).reshape(1, e_pad)

    # Exact mean denominator + root-weight/bias term, precomputed outside the kernel.
    deg = jnp.zeros((n_nodes,), jnp.float32).at[dst].add(1.0)
    inv_deg = (1.0 / jnp.maximum(deg, 1.0)).reshape(n_nodes, 1)
    root = x @ w_root.astype(jnp.float32) + bias.reshape(1, c_out).astype(jnp.float32)

    # Spline weights flattened so row index = c*K_TOTAL + k (matches in-kernel lanes).
    w_flat = (w_spline.astype(jnp.float32).transpose(1, 0, 2)
              .reshape(c_in * K_TOTAL, c_out).astype(jnp.bfloat16))
    gamma = gamma.reshape(1, c_out).astype(jnp.float32)
    beta = beta.reshape(1, c_out).astype(jnp.float32)

    return _conv_block_pallas(
        jnp.asarray(win_starts), x_j, attr, dst_p, inv_deg, root, w_flat, gamma, beta,
        n_nodes=int(n_nodes), n_acc=int(n_acc), window_w=int(window_w),
        tile_e=int(tile_e))


def conv_block_reference(x, edge_index, edge_attr, w_spline, w_root, bias, gamma, beta):
    """Pure-JAX f32 reference (same semantics, no bf16)."""
    n_nodes = x.shape[0]
    c_out = w_root.shape[1]
    src, dst = edge_index[0], edge_index[1]
    e = edge_attr.shape[0]

    x_j = x[src]
    v = jnp.clip(edge_attr, 0.0, 1.0) * (KERNEL_SIZE - DEGREE)
    fl = jnp.floor(v)
    frac = v - fl
    fli = fl.astype(jnp.int32)

    coeff = jnp.zeros((e, K_TOTAL), jnp.float32)
    k_ids = jnp.arange(K_TOTAL)[None, :]
    for k2 in range(DEGREE + 1):
        for k1 in range(DEGREE + 1):
            for k0 in range(DEGREE + 1):
                ks = (k0, k1, k2)
                b = jnp.ones((e,), jnp.float32)
                wi = jnp.zeros((e,), jnp.int32)
                stride = 1
                for d in range(DIM):
                    b = b * (frac[:, d] if ks[d] == 1 else 1.0 - frac[:, d])
                    idx = fli[:, d] + ks[d]
                    idx = jnp.where(idx >= KERNEL_SIZE, idx - KERNEL_SIZE, idx)
                    wi = wi + idx * stride
                    stride *= KERNEL_SIZE
                coeff = coeff + b[:, None] * (k_ids == wi[:, None]).astype(jnp.float32)

    msg = jnp.einsum("ek,kco,ec->eo", coeff, w_spline, x_j)
    agg = jnp.zeros((n_nodes, c_out), jnp.float32).at[dst].add(msg)
    deg = jnp.zeros((n_nodes,), jnp.float32).at[dst].add(1.0)
    out = agg / jnp.maximum(deg, 1.0)[:, None] + x @ w_root + bias.reshape(1, -1)
    out = jnp.where(out > 0.0, out, jnp.exp(jnp.minimum(out, 0.0)) - 1.0)
    mean = out.mean(axis=0, keepdims=True)
    var = ((out - mean) ** 2).mean(axis=0, keepdims=True)
    out = (out - mean) / jnp.sqrt(var + BN_EPS)
    return out * gamma.reshape(1, -1) + beta.reshape(1, -1)


if __name__ == "__main__":
    key = jax.random.PRNGKey(0)
    k_x, k_attr, k_src, k_dst, k_wsp, k_wroot, k_bias = jax.random.split(key, 7)

    N, E = 32, 64  # small synthetic graph
    x = jax.random.normal(k_x, (N, IN_CHANNELS), dtype=jnp.float32)
    edge_attr = jax.random.uniform(k_attr, (E, DIM), dtype=jnp.float32)   # pseudo-coords in [0,1)
    edge_index = jnp.stack([
        jax.random.randint(k_src, (E,), 0, N, dtype=jnp.int32),
        jax.random.randint(k_dst, (E,), 0, N, dtype=jnp.int32),
    ])

    # PyG-native SplineConv weight layout (K, C_in, C_out); BatchNorm affine defaults.
    w_spline = 0.1 * jax.random.normal(k_wsp, (K_TOTAL, IN_CHANNELS, OUT_CHANNELS),
                                       dtype=jnp.float32)
    w_root = 0.1 * jax.random.normal(k_wroot, (IN_CHANNELS, OUT_CHANNELS), dtype=jnp.float32)
    bias = 0.1 * jax.random.normal(k_bias, (OUT_CHANNELS,), dtype=jnp.float32)
    gamma = jnp.ones((OUT_CHANNELS,), dtype=jnp.float32)
    beta = jnp.zeros((OUT_CHANNELS,), dtype=jnp.float32)

    out = conv_block_forward(x, edge_index, edge_attr, w_spline, w_root, bias, gamma, beta)
    out = jax.block_until_ready(out)
    assert out.shape == (N, OUT_CHANNELS)

    ref = conv_block_reference(x, edge_index, edge_attr, w_spline, w_root, bias, gamma, beta)
    err = float(jnp.max(jnp.abs(out - ref)))
    assert err < 0.2, f"max |pallas - reference| too large: {err}"
    print("KERNEL_OK")
</pallas_src>

<mosaic_0001>
module attributes {stable_mosaic.version = 11 : i64} {
  func.func @conv_block_kernel(%arg0: i32, %arg1: memref<1xi32, #tpu.memory_space<smem>>, %arg2: memref<128x4xf32, #tpu.memory_space<vmem>>, %arg3: memref<128x3xf32, #tpu.memory_space<vmem>>, %arg4: memref<1x128xi32, #tpu.memory_space<vmem>>, %arg5: memref<32x1xf32, #tpu.memory_space<vmem>>, %arg6: memref<32x8xf32, #tpu.memory_space<vmem>>, %arg7: memref<256x8xbf16, #tpu.memory_space<vmem>>, %arg8: memref<1x8xf32, #tpu.memory_space<vmem>>, %arg9: memref<1x8xf32, #tpu.memory_space<vmem>>, %arg10: memref<32x8xf32, #tpu.memory_space<vmem>>, %arg11: memref<32x8xf32, #tpu.memory_space<vmem>>) attributes {dimension_semantics = [#tpu.dimension_semantics<arbitrary>], iteration_bounds = array<i64: 1>, scalar_prefetch = 1 : i64, scratch_operands = 1 : i64, tpu.core_type = #tpu.core_type<tc>, window_params = [{transform_indices = @transform_0, window_bounds = array<i64: 128, 4>}, {transform_indices = @transform_1, window_bounds = array<i64: 128, 3>}, {transform_indices = @transform_2, window_bounds = array<i64: 1, 128>}, {pipeline_mode = #tpu.pipeline_mode<synchronous>, transform_indices = @transform_3, window_bounds = array<i64: 32, 1>}, {pipeline_mode = #tpu.pipeline_mode<synchronous>, transform_indices = @transform_4, window_bounds = array<i64: 32, 8>}, {pipeline_mode = #tpu.pipeline_mode<synchronous>, transform_indices = @transform_5, window_bounds = array<i64: 256, 8>}, {pipeline_mode = #tpu.pipeline_mode<synchronous>, transform_indices = @transform_6, window_bounds = array<i64: 1, 8>}, {pipeline_mode = #tpu.pipeline_mode<synchronous>, transform_indices = @transform_7, window_bounds = array<i64: 1, 8>}, {pipeline_mode = #tpu.pipeline_mode<synchronous>, transform_indices = @transform_8, window_bounds = array<i64: 32, 8>}]} {
    %c0_i32 = arith.constant 0 : i32
    %0 = arith.cmpi eq, %arg0, %c0_i32 : i32
    %1 = arith.extui %0 : i1 to i32
    %c0_i32_0 = arith.constant 0 : i32
    %2 = arith.cmpi ne, %1, %c0_i32_0 : i32
    scf.if %2 {
      %cst_41 = arith.constant 0.000000e+00 : f32
      %168 = vector.broadcast %cst_41 : f32 to vector<32x8xf32>
      %c0_42 = arith.constant 0 : index
      %c0_43 = arith.constant 0 : index
      %169 = vector.load %arg11[%c0_42, %c0_43] : memref<32x8xf32, #tpu.memory_space<vmem>>, vector<32x8xf32>
      tpu.vector_store %arg11[%c0_42, %c0_43], %168 {strides = array<i32>} : memref<32x8xf32, #tpu.memory_space<vmem>>, vector<32x8xf32>,
    } else {
    }
    %c0 = arith.constant 0 : index
    %c0_1 = arith.constant 0 : index
    %3 = vector.load %arg3[%c0, %c0_1] : memref<128x3xf32, #tpu.memory_space<vmem>>, vector<128x3xf32>
    %cst = arith.constant 0.000000e+00 : f32
    %cst_2 = arith.constant 1.000000e+00 : f32
    %4 = vector.broadcast %cst : f32 to vector<128x3xf32>
    %5 = arith.maximumf %4, %3 : vector<128x3xf32>
    %6 = vector.broadcast %cst_2 : f32 to vector<128x3xf32>
    %7 = arith.minimumf %6, %5 : vector<128x3xf32>
    %cst_3 = arith.constant 3.000000e+00 : f32
    %8 = vector.broadcast %cst_3 : f32 to vector<128x3xf32>
    %9 = arith.mulf %7, %8 : vector<128x3xf32>
    %10 = math.floor %9 : vector<128x3xf32>
    %11 = arith.subf %9, %10 : vector<128x3xf32>
    %12 = arith.fptosi %10 : vector<128x3xf32> to vector<128x3xi32>
    %13 = tpu.iota {dimensions = array<i32: 1>} : vector<1x256xi32>
    %c6_i32 = arith.constant 6 : i32
    %14 = vector.broadcast %c6_i32 : i32 to vector<1x256xi32>
    %15 = arith.shrsi %13, %14 : vector<1x256xi32>
    %c63_i32 = arith.constant 63 : i32
    %16 = vector.broadcast %c63_i32 : i32 to vector<1x256xi32>
    %17 = arith.andi %13, %16 : vector<1x256xi32>
    %c0_4 = arith.constant 0 : index
    %c0_5 = arith.constant 0 : index
    %18 = vector.load %arg2[%c0_4, %c0_5] : memref<128x4xf32, #tpu.memory_space<vmem>>, vector<128x4xf32>
    %cst_6 = arith.constant 0.000000e+00 : f32
    %19 = vector.broadcast %cst_6 : f32 to vector<128x256xf32>
    %c0_i32_7 = arith.constant 0 : i32
    %20 = vector.broadcast %c0_i32_7 : i32 to vector<1x256xi32>
    %21 = arith.cmpi eq, %15, %20 : vector<1x256xi32>
    %22 = vector.extract_strided_slice %18 {offsets = [0, 0], sizes = [128, 1], strides = [1, 1]} : vector<128x4xf32> to vector<128x1xf32>
    %23 = vector.shape_cast %21 : vector<1x256xi1> to vector<1x256xi1>
    %24 = vector.broadcast %23 : vector<1x256xi1> to vector<128x256xi1>
    %25 = vector.shape_cast %22 : vector<128x1xf32> to vector<128x1xf32>
    %26 = vector.broadcast %25 : vector<128x1xf32> to vector<128x256xf32>
    %27 = arith.select %24, %26, %19 : vector<128x256xi1>, vector<128x256xf32>
    %c1_i32 = arith.constant 1 : i32
    %28 = vector.broadcast %c1_i32 : i32 to vector<1x256xi32>
    %29 = arith.cmpi eq, %15, %28 : vector<1x256xi32>
    %30 = vector.extract_strided_slice %18 {offsets = [0, 1], sizes = [128, 1], strides = [1, 1]} : vector<128x4xf32> to vector<128x1xf32>
    %31 = vector.shape_cast %29 : vector<1x256xi1> to vector<1x256xi1>
    %32 = vector.broadcast %31 : vector<1x256xi1> to vector<128x256xi1>
    %33 = vector.shape_cast %30 : vector<128x1xf32> to vector<128x1xf32>
    %34 = vector.broadcast %33 : vector<128x1xf32> to vector<128x256xf32>
    %35 = arith.select %32, %34, %27 : vector<128x256xi1>, vector<128x256xf32>
    %c2_i32 = arith.constant 2 : i32
    %36 = vector.broadcast %c2_i32 : i32 to vector<1x256xi32>
    %37 = arith.cmpi eq, %15, %36 : vector<1x256xi32>
    %38 = vector.extract_strided_slice %18 {offsets = [0, 2], sizes = [128, 1], strides = [1, 1]} : vector<128x4xf32> to vector<128x1xf32>
    %39 = vector.shape_cast %37 : vector<1x256xi1> to vector<1x256xi1>
    %40 = vector.broadcast %39 : vector<1x256xi1> to vector<128x256xi1>
    %41 = vector.shape_cast %38 : vector<128x1xf32> to vector<128x1xf32>
    %42 = vector.broadcast %41 : vector<128x1xf32> to vector<128x256xf32>
    %43 = arith.select %40, %42, %35 : vector<128x256xi1>, vector<128x256xf32>
    %c3_i32 = arith.constant 3 : i32
    %44 = vector.broadcast %c3_i32 : i32 to vector<1x256xi32>
    %45 = arith.cmpi eq, %15, %44 : vector<1x256xi32>
    %46 = vector.extract_strided_slice %18 {offsets = [0, 3], sizes = [128, 1], strides = [1, 1]} : vector<128x4xf32> to vector<128x1xf32>
    %47 = vector.shape_cast %45 : vector<1x256xi1> to vector<1x256xi1>
    %48 = vector.broadcast %47 : vector<1x256xi1> to vector<128x256xi1>
    %49 = vector.shape_cast %46 : vector<128x1xf32> to vector<128x1xf32>
    %50 = vector.broadcast %49 : vector<128x1xf32> to vector<128x256xf32>
    %51 = arith.select %48, %50, %43 : vector<128x256xi1>, vector<128x256xf32>
    %c0_i32_8 = arith.constant 0 : i32
    %52 = vector.broadcast %c0_i32_8 : i32 to vector<1x256xi32>
    %53 = arith.shrsi %17, %52 : vector<1x256xi32>
    %c3_i32_9 = arith.constant 3 : i32
    %54 = vector.broadcast %c3_i32_9 : i32 to vector<1x256xi32>
    %55 = arith.andi %53, %54 : vector<1x256xi32>
    %56 = vector.extract_strided_slice %12 {offsets = [0, 0], sizes = [128, 1], strides = [1, 1]} : vector<128x3xi32> to vector<128x1xi32>
    %57 = vector.extract_strided_slice %11 {offsets = [0, 0], sizes = [128, 1], strides = [1, 1]} : vector<128x3xf32> to vector<128x1xf32>
    %c1_i32_10 = arith.constant 1 : i32
    %58 = vector.broadcast %c1_i32_10 : i32 to vector<128x1xi32>
    %59 = arith.addi %56, %58 : vector<128x1xi32>
    %c4_i32 = arith.constant 4 : i32
    %60 = vector.broadcast %c4_i32 : i32 to vector<128x1xi32>
    %61 = arith.cmpi sge, %59, %60 : vector<128x1xi32>
    %c4_i32_11 = arith.constant 4 : i32
    %62 = vector.broadcast %c4_i32_11 : i32 to vector<128x1xi32>
    %63 = arith.subi %59, %62 : vector<128x1xi32>
    %64 = arith.select %61, %63, %59 : vector<128x1xi1>, vector<128x1xi32>
    %65 = vector.broadcast %55 : vector<1x256xi32> to vector<128x256xi32>
    %66 = vector.broadcast %56 : vector<128x1xi32> to vector<128x256xi32>
    %67 = arith.cmpi eq, %65, %66 : vector<128x256xi32>
    %cst_12 = arith.constant 1.000000e+00 : f32
    %68 = vector.broadcast %cst_12 : f32 to vector<128x1xf32>
    %69 = arith.subf %68, %57 : vector<128x1xf32>
    %cst_13 = arith.constant 0.000000e+00 : f32
    %70 = vector.shape_cast %69 : vector<128x1xf32> to vector<128x1xf32>
    %71 = vector.broadcast %70 : vector<128x1xf32> to vector<128x256xf32>
    %72 = vector.broadcast %cst_13 : f32 to vector<128x256xf32>
    %73 = arith.select %67, %71, %72 : vector<128x256xi1>, vector<128x256xf32>
    %74 = vector.broadcast %55 : vector<1x256xi32> to vector<128x256xi32>
    %75 = vector.broadcast %64 : vector<128x1xi32> to vector<128x256xi32>
    %76 = arith.cmpi eq, %74, %75 : vector<128x256xi32>
    %cst_14 = arith.constant 0.000000e+00 : f32
    %77 = vector.shape_cast %57 : vector<128x1xf32> to vector<128x1xf32>
    %78 = vector.broadcast %77 : vector<128x1xf32> to vector<128x256xf32>
    %79 = vector.broadcast %cst_14 : f32 to vector<128x256xf32>
    %80 = arith.select %76, %78, %79 : vector<128x256xi1>, vector<128x256xf32>
    %81 = arith.addf %73, %80 : vector<128x256xf32>
    %82 = arith.mulf %51, %81 : vector<128x256xf32>
    %c2_i32_15 = arith.constant 2 : i32
    %83 = vector.broadcast %c2_i32_15 : i32 to vector<1x256xi32>
    %84 = arith.shrsi %17, %83 : vector<1x256xi32>
    %c3_i32_16 = arith.constant 3 : i32
    %85 = vector.broadcast %c3_i32_16 : i32 to vector<1x256xi32>
    %86 = arith.andi %84, %85 : vector<1x256xi32>
    %87 = vector.extract_strided_slice %12 {offsets = [0, 1], sizes = [128, 1], strides = [1, 1]} : vector<128x3xi32> to vector<128x1xi32>
    %88 = vector.extract_strided_slice %11 {offsets = [0, 1], sizes = [128, 1], strides = [1, 1]} : vector<128x3xf32> to vector<128x1xf32>
    %c1_i32_17 = arith.constant 1 : i32
    %89 = vector.broadcast %c1_i32_17 : i32 to vector<128x1xi32>
    %90 = arith.addi %87, %89 : vector<128x1xi32>
    %c4_i32_18 = arith.constant 4 : i32
    %91 = vector.broadcast %c4_i32_18 : i32 to vector<128x1xi32>
    %92 = arith.cmpi sge, %90, %91 : vector<128x1xi32>
    %c4_i32_19 = arith.constant 4 : i32
    %93 = vector.broadcast %c4_i32_19 : i32 to vector<128x1xi32>
    %94 = arith.subi %90, %93 : vector<128x1xi32>
    %95 = arith.select %92, %94, %90 : vector<128x1xi1>, vector<128x1xi32>
    %96 = vector.broadcast %86 : vector<1x256xi32> to vector<128x256xi32>
    %97 = vector.broadcast %87 : vector<128x1xi32> to vector<128x256xi32>
    %98 = arith.cmpi eq, %96, %97 : vector<128x256xi32>
    %cst_20 = arith.constant 1.000000e+00 : f32
    %99 = vector.broadcast %cst_20 : f32 to vector<128x1xf32>
    %100 = arith.subf %99, %88 : vector<128x1xf32>
    %cst_21 = arith.constant 0.000000e+00 : f32
    %101 = vector.shape_cast %100 : vector<128x1xf32> to vector<128x1xf32>
    %102 = vector.broadcast %101 : vector<128x1xf32> to vector<128x256xf32>
    %103 = vector.broadcast %cst_21 : f32 to vector<128x256xf32>
    %104 = arith.select %98, %102, %103 : vector<128x256xi1>, vector<128x256xf32>
    %105 = vector.broadcast %86 : vector<1x256xi32> to vector<128x256xi32>
    %106 = vector.broadcast %95 : vector<128x1xi32> to vector<128x256xi32>
    %107 = arith.cmpi eq, %105, %106 : vector<128x256xi32>
    %cst_22 = arith.constant 0.000000e+00 : f32
    %108 = vector.shape_cast %88 : vector<128x1xf32> to vector<128x1xf32>
    %109 = vector.broadcast %108 : vector<128x1xf32> to vector<128x256xf32>
    %110 = vector.broadcast %cst_22 : f32 to vector<128x256xf32>
    %111 = arith.select %107, %109, %110 : vector<128x256xi1>, vector<128x256xf32>
    %112 = arith.addf %104, %111 : vector<128x256xf32>
    %113 = arith.mulf %82, %112 : vector<128x256xf32>
    %c4_i32_23 = arith.constant 4 : i32
    %114 = vector.broadcast %c4_i32_23 : i32 to vector<1x256xi32>
    %115 = arith.shrsi %17, %114 : vector<1x256xi32>
    %c3_i32_24 = arith.constant 3 : i32
    %116 = vector.broadcast %c3_i32_24 : i32 to vector<1x256xi32>
    %117 = arith.andi %115, %116 : vector<1x256xi32>
    %118 = vector.extract_strided_slice %12 {offsets = [0, 2], sizes = [128, 1], strides = [1, 1]} : vector<128x3xi32> to vector<128x1xi32>
    %119 = vector.extract_strided_slice %11 {offsets = [0, 2], sizes = [128, 1], strides = [1, 1]} : vector<128x3xf32> to vector<128x1xf32>
    %c1_i32_25 = arith.constant 1 : i32
    %120 = vector.broadcast %c1_i32_25 : i32 to vector<128x1xi32>
    %121 = arith.addi %118, %120 : vector<128x1xi32>
    %c4_i32_26 = arith.constant 4 : i32
    %122 = vector.broadcast %c4_i32_26 : i32 to vector<128x1xi32>
    %123 = arith.cmpi sge, %121, %122 : vector<128x1xi32>
    %c4_i32_27 = arith.constant 4 : i32
    %124 = vector.broadcast %c4_i32_27 : i32 to vector<128x1xi32>
    %125 = arith.subi %121, %124 : vector<128x1xi32>
    %126 = arith.select %123, %125, %121 : vector<128x1xi1>, vector<128x1xi32>
    %127 = vector.broadcast %117 : vector<1x256xi32> to vector<128x256xi32>
    %128 = vector.broadcast %118 : vector<128x1xi32> to vector<128x256xi32>
    %129 = arith.cmpi eq, %127, %128 : vector<128x256xi32>
    %cst_28 = arith.constant 1.000000e+00 : f32
    %130 = vector.broadcast %cst_28 : f32 to vector<128x1xf32>
    %131 = arith.subf %130, %119 : vector<128x1xf32>
    %cst_29 = arith.constant 0.000000e+00 : f32
    %132 = vector.shape_cast %131 : vector<128x1xf32> to vector<128x1xf32>
    %133 = vector.broadcast %132 : vector<128x1xf32> to vector<128x256xf32>
    %134 = vector.broadcast %cst_29 : f32 to vector<128x256xf32>
    %135 = arith.select %129, %133, %134 : vector<128x256xi1>, vector<128x256xf32>
    %136 = vector.broadcast %117 : vector<1x256xi32> to vector<128x256xi32>
    %137 = vector.broadcast %126 : vector<128x1xi32> to vector<128x256xi32>
    %138 = arith.cmpi eq, %136, %137 : vector<128x256xi32>
    %cst_30 = arith.constant 0.000000e+00 : f32
    %139 = vector.shape_cast %119 : vector<128x1xf32> to vector<128x1xf32>
    %140 = vector.broadcast %139 : vector<128x1xf32> to vector<128x256xf32>
    %141 = vector.broadcast %cst_30 : f32 to vector<128x256xf32>
    %142 = arith.select %138, %140, %141 : vector<128x256xi1>, vector<128x256xf32>
    %143 = arith.addf %135, %142 : vector<128x256xf32>
    %144 = arith.mulf %113, %143 : vector<128x256xf32>
    %145 = arith.truncf %144 : vector<128x256xf32> to vector<128x256xbf16>
    %c0_31 = arith.constant 0 : index
    %c0_32 = arith.constant 0 : index
    %146 = vector.load %arg7[%c0_31, %c0_32] : memref<256x8xbf16, #tpu.memory_space<vmem>>, vector<256x8xbf16>
    %cst_33 = arith.constant dense<0.000000e+00> : vector<128x8xf32>
    %147 = tpu.matmul %145, %146, %cst_33 {dimension_numbers = #tpu.dot_dimension_numbers<[1], [0], [0], [1], [0, 0, 1, 1], [], []>} : vector<128x256xbf16>, vector<256x8xbf16>, vector<128x8xf32> -> vector<128x8xf32>
    %148 = arith.index_cast %arg0 : i32 to index
    %149 = memref.load %arg1[%148] : memref<1xi32, #tpu.memory_space<smem>>
    %150 = tpu.assume_multiple %149, 8 : i32
    %151 = tpu.iota {dimensions = array<i32: 0>} : vector<32x128xi32>
    %152 = vector.broadcast %150 : i32 to vector<32x128xi32>
    %153 = arith.addi %152, %151 : vector<32x128xi32>
    %c0_34 = arith.constant 0 : index
    %c0_35 = arith.constant 0 : index
    %154 = vector.load %arg4[%c0_34, %c0_35] : memref<1x128xi32, #tpu.memory_space<vmem>>, vector<1x128xi32>
    %155 = vector.broadcast %154 : vector<1x128xi32> to vector<32x128xi32>
    %156 = arith.cmpi eq, %153, %155 : vector<32x128xi32>
    %157 = arith.extui %156 : vector<32x128xi1> to vector<32x128xi32>
    %158 = arith.sitofp %157 : vector<32x128xi32> to vector<32x128xf32>
    %cst_36 = arith.constant dense<0.000000e+00> : vector<32x8xf32>
    %159 = tpu.matmul %158, %147, %cst_36 {dimension_numbers = #tpu.dot_dimension_numbers<[1], [0], [0], [1], [0, 0, 1, 1], [], []>} : vector<32x128xf32>, vector<128x8xf32>, vector<32x8xf32> -> vector<32x8xf32>
    %160 = arith.index_cast %150 : i32 to index
    %c0_37 = arith.constant 0 : index
    %161 = vector.load %arg11[%160, %c0_37] : memref<32x8xf32, #tpu.memory_space<vmem>>, vector<32x8xf32>
    %162 = arith.addf %161, %159 : vector<32x8xf32>
    %163 = arith.index_cast %150 : i32 to index
    %c0_38 = arith.constant 0 : index
    %164 = vector.load %arg11[%163, %c0_38] : memref<32x8xf32, #tpu.memory_space<vmem>>, vector<32x8xf32>
    tpu.vector_store %arg11[%163, %c0_38], %162 {strides = array<i32>} : memref<32x8xf32, #tpu.memory_space<vmem>>, vector<32x8xf32>,
    %c0_i32_39 = arith.constant 0 : i32
    %165 = arith.cmpi eq, %arg0, %c0_i32_39 : i32
    %166 = arith.extui %165 : i1 to i32
    %c0_i32_40 = arith.constant 0 : i32
    %167 = arith.cmpi ne, %166, %c0_i32_40 : i32
    scf.if %167 {
      %c0_41 = arith.constant 0 : index
      %c0_42 = arith.constant 0 : index
      %168 = vector.load %arg11[%c0_41, %c0_42] : memref<32x8xf32, #tpu.memory_space<vmem>>, vector<32x8xf32>
      %c0_43 = arith.constant 0 : index
      %c0_44 = arith.constant 0 : index
      %169 = vector.load %arg5[%c0_43, %c0_44] : memref<32x1xf32, #tpu.memory_space<vmem>>, vector<32x1xf32>
      %170 = vector.broadcast %169 : vector<32x1xf32> to vector<32x8xf32>
      %171 = arith.mulf %168, %170 : vector<32x8xf32>
      %c0_45 = arith.constant 0 : index
      %c0_46 = arith.constant 0 : index
      %172 = vector.load %arg6[%c0_45, %c0_46] : memref<32x8xf32, #tpu.memory_space<vmem>>, vector<32x8xf32>
      %173 = arith.addf %171, %172 : vector<32x8xf32>
      %cst_47 = arith.constant 0.000000e+00 : f32
      %174 = vector.broadcast %cst_47 : f32 to vector<32x8xf32>
      %175 = arith.cmpf ogt, %173, %174 : vector<32x8xf32>
      %cst_48 = arith.constant 0.000000e+00 : f32
      %176 = vector.broadcast %cst_48 : f32 to vector<32x8xf32>
      %177 = arith.minimumf %173, %176 : vector<32x8xf32>
      %178 = math.exp %177 : vector<32x8xf32>
      %cst_49 = arith.constant 1.000000e+00 : f32
      %179 = vector.broadcast %cst_49 : f32 to vector<32x8xf32>
      %180 = arith.subf %178, %179 : vector<32x8xf32>
      %181 = arith.select %175, %173, %180 : vector<32x8xi1>, vector<32x8xf32>
      %cst_50 = arith.constant dense<0.000000e+00> : vector<8xf32>
      %182 = vector.multi_reduction <add>, %181, %cst_50 [0] : vector<32x8xf32> to vector<8xf32>
      %183 = vector.shape_cast %182 : vector<8xf32> to vector<1x8xf32>
      %cst_51 = arith.constant 3.200000e+01 : f32
      %184 = vector.broadcast %cst_51 : f32 to vector<1x8xf32>
      %185 = arith.divf %183, %184 : vector<1x8xf32>
      %186 = vector.broadcast %185 : vector<1x8xf32> to vector<32x8xf32>
      %187 = arith.subf %181, %186 : vector<32x8xf32>
      %188 = arith.mulf %187, %187 : vector<32x8xf32>
      %cst_52 = arith.constant dense<0.000000e+00> : vector<8xf32>
      %189 = vector.multi_reduction <add>, %188, %cst_52 [0] : vector<32x8xf32> to vector<8xf32>
      %190 = vector.shape_cast %189 : vector<8xf32> to vector<1x8xf32>
      %cst_53 = arith.constant 3.200000e+01 : f32
      %191 = vector.broadcast %cst_53 : f32 to vector<1x8xf32>
      %192 = arith.divf %190, %191 : vector<1x8xf32>
      %193 = vector.broadcast %185 : vector<1x8xf32> to vector<32x8xf32>
      %194 = arith.subf %181, %193 : vector<32x8xf32>
      %cst_54 = arith.constant 9.99999974E-6 : f32
      %195 = vector.broadcast %cst_54 : f32 to vector<1x8xf32>
      %196 = arith.addf %192, %195 : vector<1x8xf32>
      %197 = math.rsqrt %196 : vector<1x8xf32>
      %198 = vector.broadcast %197 : vector<1x8xf32> to vector<32x8xf32>
      %199 = arith.mulf %194, %198 : vector<32x8xf32>
      %c0_55 = arith.constant 0 : index
      %c0_56 = arith.constant 0 : index
      %200 = vector.load %arg8[%c0_55, %c0_56] : memref<1x8xf32, #tpu.memory_space<vmem>>, vector<1x8xf32>
      %201 = vector.broadcast %200 : vector<1x8xf32> to vector<32x8xf32>
      %202 = arith.mulf %199, %201 : vector<32x8xf32>
      %c0_57 = arith.constant 0 : index
      %c0_58 = arith.constant 0 : index
      %203 = vector.load %arg9[%c0_57, %c0_58] : memref<1x8xf32, #tpu.memory_space<vmem>>, vector<1x8xf32>
      %204 = vector.broadcast %203 : vector<1x8xf32> to vector<32x8xf32>
      %205 = arith.addf %202, %204 : vector<32x8xf32>
      %c0_59 = arith.constant 0 : index
      %c0_60 = arith.constant 0 : index
      %206 = vector.load %arg10[%c0_59, %c0_60] : memref<32x8xf32, #tpu.memory_space<vmem>>, vector<32x8xf32>
      tpu.vector_store %arg10[%c0_59, %c0_60], %205 {strides = array<i32>} : memref<32x8xf32, #tpu.memory_space<vmem>>, vector<32x8xf32>,
    } else {
    }
    return
  }
  func.func @transform_0(%arg0: i32, %arg1: memref<1xi32, #tpu.memory_space<smem>>) -> (i32, i32) {
    %c0_i32 = arith.constant 0 : i32
    %c0_i32_0 = arith.constant 0 : i32
    return %arg0, %c0_i32 : i32, i32
  }
  func.func @transform_1(%arg0: i32, %arg1: memref<1xi32, #tpu.memory_space<smem>>) -> (i32, i32) {
    %c0_i32 = arith.constant 0 : i32
    %c0_i32_0 = arith.constant 0 : i32
    return %arg0, %c0_i32 : i32, i32
  }
  func.func @transform_2(%arg0: i32, %arg1: memref<1xi32, #tpu.memory_space<smem>>) -> (i32, i32) {
    %c0_i32 = arith.constant 0 : i32
    %c0_i32_0 = arith.constant 0 : i32
    return %c0_i32, %arg0 : i32, i32
  }
  func.func @transform_3(%arg0: i32, %arg1: memref<1xi32, #tpu.memory_space<smem>>) -> (i32, i32) {
    %c0_i32 = arith.constant 0 : i32
    %c0_i32_0 = arith.constant 0 : i32
    %c0_i32_1 = arith.constant 0 : i32
    return %c0_i32, %c0_i32_0 : i32, i32
  }
  func.func @transform_4(%arg0: i32, %arg1: memref<1xi32, #tpu.memory_space<smem>>) -> (i32, i32) {
    %c0_i32 = arith.constant 0 : i32
    %c0_i32_0 = arith.constant 0 : i32
    %c0_i32_1 = arith.constant 0 : i32
    return %c0_i32, %c0_i32_0 : i32, i32
  }
  func.func @transform_5(%arg0: i32, %arg1: memref<1xi32, #tpu.memory_space<smem>>) -> (i32, i32) {
    %c0_i32 = arith.constant 0 : i32
    %c0_i32_0 = arith.constant 0 : i32
    %c0_i32_1 = arith.constant 0 : i32
    return %c0_i32, %c0_i32_0 : i32, i32
  }
  func.func @transform_6(%arg0: i32, %arg1: memref<1xi32, #tpu.memory_space<smem>>) -> (i32, i32) {
    %c0_i32 = arith.constant 0 : i32
    %c0_i32_0 = arith.constant 0 : i32
    %c0_i32_1 = arith.constant 0 : i32
    return %c0_i32, %c0_i32_0 : i32, i32
  }
  func.func @transform_7(%arg0: i32, %arg1: memref<1xi32, #tpu.memory_space<smem>>) -> (i32, i32) {
    %c0_i32 = arith.constant 0 : i32
    %c0_i32_0 = arith.constant 0 : i32
    %c0_i32_1 = arith.constant 0 : i32
    return %c0_i32, %c0_i32_0 : i32, i32
  }
  func.func @transform_8(%arg0: i32, %arg1: memref<1xi32, #tpu.memory_space<smem>>) -> (i32, i32) {
    %c0_i32 = arith.constant 0 : i32
    %c0_i32_0 = arith.constant 0 : i32
    %c0_i32_1 = arith.constant 0 : i32
    return %c0_i32, %c0_i32_0 : i32, i32
  }
}

</mosaic_0001>

<llo_original>
// kernel: _conv_block_pallas.1
$region0: #{_conv_block_pallas.1}
  #allocation0 [shape = 'u32[]', space=smem, size = 0x4, offset = 0x4, fixed_abs, tag = 'smem constant byte address 0x4 - core index']
  #allocation1 [shape = 'u32[72,128]{1,0:T(1,128)}', space=vmem, size = 0x9000, scoped, tag = 'internal scratch']
  #allocation2 [shape = 'f32[32,8]{1,0:T(8,128)}', space=vmem, size = 0x4000, scoped, tag = 'scratch operand']
  #allocation3 [shape = 's32[1]{0}', space=sflag, size = 0x4, scoped, tag = 'scoped memory for _conv_block_pallas.1']
  #allocation4 [shape = 's32[1]{0:T(128)S(6)}', space=smem, size = 0x200, scoped, tag = 'prefetched SMEM operand 0']
  %s0 = inlined_call_operand.<no memory space> [shape: s32[1], index: 0, kind: input, shape index: {}]
  %s1 = inlined_call_operand.vmem [shape: f32[128,4], index: 1, kind: input, shape index: {}]
  %s2 = inlined_call_operand.vmem [shape: f32[128,3], index: 2, kind: input, shape index: {}]
  %s3 = inlined_call_operand.vmem [shape: s32[1,128], index: 3, kind: input, shape index: {}]
  %s4 = inlined_call_operand.vmem [shape: f32[32,1], index: 4, kind: input, shape index: {}]
  %s5 = inlined_call_operand.vmem [shape: f32[32,8], index: 5, kind: input, shape index: {}]
  %s6 = inlined_call_operand.vmem [shape: bf16[256,8], index: 6, kind: input, shape index: {}]
  %s7 = inlined_call_operand.vmem [shape: f32[1,8], index: 7, kind: input, shape index: {}]
  %s8 = inlined_call_operand.vmem [shape: f32[1,8], index: 8, kind: input, shape index: {}]
  %s9 = inlined_call_operand.vmem [shape: f32[32,8], index: 9, kind: output, shape index: {}]
  %s10 = sld [smem:[#allocation0]]
  $region50: #{_conv_block_pallas.1} parent=0
    _
  %s12 = ssub.s32 1, %s10
  %s13 = scalar_select 0, %s12, %s10
  %14 = sst [smem:[#allocation4]] %s0
  // Predicated region
  $region2: #{_conv_block_pallas.1} parent=0 // pred_check
    _
  $region3: #{_conv_block_pallas.1} parent=0 // pred_check_branch
    %16 = sbr.rel (0) target = $region5
  $region4: #{_conv_block_pallas.1} parent=0 // pred_region
    _
  $region5: #{_conv_block_pallas.1} parent=0 // pred_fallthru
    _
  // Predicated region
  $region6: #{_conv_block_pallas.1} parent=0 // pred_check
    _
  $region7: #{_conv_block_pallas.1} parent=0 // pred_check_branch
    %18 = sbr.rel (0) target = $region9
  $region8: #{_conv_block_pallas.1} parent=0 // pred_region
    _
  $region9: #{_conv_block_pallas.1} parent=0 // pred_fallthru
    _
  // Predicated region
  $region10: #{_conv_block_pallas.1} parent=0 // pred_check
    _
  $region11: #{_conv_block_pallas.1} parent=0 // pred_check_branch
    %20 = sbr.rel (0) target = $region13
  $region12: #{_conv_block_pallas.1} parent=0 // pred_region
    _
  $region13: #{_conv_block_pallas.1} parent=0 // pred_fallthru
    _
  // Predicated region
  $region14: #{_conv_block_pallas.1} parent=0 // pred_check
    _
  $region15: #{_conv_block_pallas.1} parent=0 // pred_check_branch
    %22 = sbr.rel (0) target = $region17
  $region16: #{_conv_block_pallas.1} parent=0 // pred_region
    _
  $region17: #{_conv_block_pallas.1} parent=0 // pred_fallthru
    _
  // Predicated region
  $region18: #{_conv_block_pallas.1} parent=0 // pred_check
    _
  $region19: #{_conv_block_pallas.1} parent=0 // pred_check_branch
    %24 = sbr.rel (0) target = $region21
  $region20: #{_conv_block_pallas.1} parent=0 // pred_region
    _
  $region21: #{_conv_block_pallas.1} parent=0 // pred_fallthru
    _
  // Predicated region
  $region22: #{_conv_block_pallas.1} parent=0 // pred_check
    _
  $region23: #{_conv_block_pallas.1} parent=0 // pred_check_branch
    %26 = sbr.rel (0) target = $region25
  $region24: #{_conv_block_pallas.1} parent=0 // pred_region
    _
  $region25: #{_conv_block_pallas.1} parent=0 // pred_fallthru
    _
  // Predicated region
  $region26: #{_conv_block_pallas.1} parent=0 // pred_check
    _
  $region27: #{_conv_block_pallas.1} parent=0 // pred_check_branch
    %28 = sbr.rel (0) target = $region29
  $region28: #{_conv_block_pallas.1} parent=0 // pred_region
    _
  $region29: #{_conv_block_pallas.1} parent=0 // pred_fallthru
    _
  // Predicated region
  $region30: #{_conv_block_pallas.1} parent=0 // pred_check
    _
  $region31: #{_conv_block_pallas.1} parent=0 // pred_check_branch
    %30 = sbr.rel (0) target = $region33
  $region32: #{_conv_block_pallas.1} parent=0 // pred_region
    _
  $region33: #{_conv_block_pallas.1} parent=0 // pred_fallthru
    _
  %p31 = scmp.eq.s32.totalorder 0, 0
  // Predicated region
  $region34: #{_conv_block_pallas.1} parent=0 // pred_check
    %p32 = pneg %p31
  $region35: #{_conv_block_pallas.1} parent=0 // pred_check_branch
    %34 = sbr.rel (%p32) target = $region37
  $region36: #{_conv_block_pallas.1} parent=0 // pred_region
    %vm35 = vcmask 64512
    %36 = vst.msk [vmem:[#allocation2] sm:$0xff] %vm35, 0.0
    %37 = vst.msk [vmem:[#allocation2 + $0x8] sm:$0xff] %vm35, 0.0
    %38 = vst.msk [vmem:[#allocation2 + $0x10] sm:$0xff] %vm35, 0.0
    %39 = vst.msk [vmem:[#allocation2 + $0x18] sm:$0xff] %vm35, 0.0
  $region37: #{_conv_block_pallas.1} parent=0 // pred_fallthru
    _
  %v40 = vld [vmem:[%s2] sm:$0xff]
  %v41 = vld [vmem:[%s2 + $0x8] sm:$0xff]
  %v42 = vld [vmem:[%s2 + $0x10] sm:$0xff]
  %v43 = vld [vmem:[%s2 + $0x18] sm:$0xff]
  %v44 = vld [vmem:[%s2 + $0x20] sm:$0xff]
  %v45 = vld [vmem:[%s2 + $0x28] sm:$0xff]
  %v46 = vld [vmem:[%s2 + $0x30] sm:$0xff]
  %v47 = vld [vmem:[%s2 + $0x38] sm:$0xff]
  %v48 = vld [vmem:[%s2 + $0x40] sm:$0xff]
  %v49 = vld [vmem:[%s2 + $0x48] sm:$0xff]
  %v50 = vld [vmem:[%s2 + $0x50] sm:$0xff]
  %v51 = vld [vmem:[%s2 + $0x58] sm:$0xff]
  %v52 = vld [vmem:[%s2 + $0x60] sm:$0xff]
  %v53 = vld [vmem:[%s2 + $0x68] sm:$0xff]
  %v54 = vld [vmem:[%s2 + $0x70] sm:$0xff]
  %v55 = vld [vmem:[%s2 + $0x78] sm:$0xff]
  %v56 = vmax.f32 %v40, 0.0
  %v57 = vmax.f32 %v41, 0.0
  %v58 = vmax.f32 %v42, 0.0
  %v59 = vmax.f32 %v43, 0.0
  %v60 = vmax.f32 %v44, 0.0
  %v61 = vmax.f32 %v45, 0.0
  %v62 = vmax.f32 %v46, 0.0
  %v63 = vmax.f32 %v47, 0.0
  %v64 = vmax.f32 %v48, 0.0
  %v65 = vmax.f32 %v49, 0.0
  %v66 = vmax.f32 %v50, 0.0
  %v67 = vmax.f32 %v51, 0.0
  %v68 = vmax.f32 %v52, 0.0
  %v69 = vmax.f32 %v53, 0.0
  %v70 = vmax.f32 %v54, 0.0
  %v71 = vmax.f32 %v55, 0.0
  %v72 = vmin.f32 %v56, 1.0
  %v73 = vmin.f32 %v57, 1.0
  %v74 = vmin.f32 %v58, 1.0
  %v75 = vmin.f32 %v59, 1.0
  %v76 = vmin.f32 %v60, 1.0
  %v77 = vmin.f32 %v61, 1.0
  %v78 = vmin.f32 %v62, 1.0
  %v79 = vmin.f32 %v63, 1.0
  %v80 = vmin.f32 %v64, 1.0
  %v81 = vmin.f32 %v65, 1.0
  %v82 = vmin.f32 %v66, 1.0
  %v83 = vmin.f32 %v67, 1.0
  %v84 = vmin.f32 %v68, 1.0
  %v85 = vmin.f32 %v69, 1.0
  %v86 = vmin.f32 %v70, 1.0
  %v87 = vmin.f32 %v71, 1.0
  %v88 = vmul.f32 %v72, 3.0
  %v89 = vmul.f32 %v73, 3.0
  %v90 = vmul.f32 %v74, 3.0
  %v91 = vmul.f32 %v75, 3.0
  %v92 = vmul.f32 %v76, 3.0
  %v93 = vmul.f32 %v77, 3.0
  %v94 = vmul.f32 %v78, 3.0
  %v95 = vmul.f32 %v79, 3.0
  %v96 = vmul.f32 %v80, 3.0
  %v97 = vmul.f32 %v81, 3.0
  %v98 = vmul.f32 %v82, 3.0
  %v99 = vmul.f32 %v83, 3.0
  %v100 = vmul.f32 %v84, 3.0
  %v101 = vmul.f32 %v85, 3.0
  %v102 = vmul.f32 %v86, 3.0
  %v103 = vmul.f32 %v87, 3.0
  %v104 = vfloor.f32 %v88
  %v105 = vfloor.f32 %v89
  %v106 = vfloor.f32 %v90
  %v107 = vfloor.f32 %v91
  %v108 = vfloor.f32 %v92
  %v109 = vfloor.f32 %v93
  %v110 = vfloor.f32 %v94
  %v111 = vfloor.f32 %v95
  %v112 = vfloor.f32 %v96
  %v113 = vfloor.f32 %v97
  %v114 = vfloor.f32 %v98
  %v115 = vfloor.f32 %v99
  %v116 = vfloor.f32 %v100
  %v117 = vfloor.f32 %v101
  %v118 = vfloor.f32 %v102
  %v119 = vfloor.f32 %v103
  %v120 = vsub.f32 %v88, %v104
  %v121 = vsub.f32 %v89, %v105
  %v122 = vsub.f32 %v90, %v106
  %v123 = vsub.f32 %v91, %v107
  %v124 = vsub.f32 %v92, %v108
  %v125 = vsub.f32 %v93, %v109
  %v126 = vsub.f32 %v94, %v110
  %v127 = vsub.f32 %v95, %v111
  %v128 = vsub.f32 %v96, %v112
  %v129 = vsub.f32 %v97, %v113
  %v130 = vsub.f32 %v98, %v114
  %v131 = vsub.f32 %v99, %v115
  %v132 = vsub.f32 %v100, %v116
  %v133 = vsub.f32 %v101, %v117
  %v134 = vsub.f32 %v102, %v118
  %v135 = vsub.f32 %v103, %v119
  %v136 = vcvt.f32.s32.to.zero.pseudo %v104
  %v137 = vcvt.f32.s32.to.zero.pseudo %v105
  %v138 = vcvt.f32.s32.to.zero.pseudo %v106
  %v139 = vcvt.f32.s32.to.zero.pseudo %v107
  %v140 = vcvt.f32.s32.to.zero.pseudo %v108
  %v141 = vcvt.f32.s32.to.zero.pseudo %v109
  %v142 = vcvt.f32.s32.to.zero.pseudo %v110
  %v143 = vcvt.f32.s32.to.zero.pseudo %v111
  %v144 = vcvt.f32.s32.to.zero.pseudo %v112
  %v145 = vcvt.f32.s32.to.zero.pseudo %v113
  %v146 = vcvt.f32.s32.to.zero.pseudo %v114
  %v147 = vcvt.f32.s32.to.zero.pseudo %v115
  %v148 = vcvt.f32.s32.to.zero.pseudo %v116
  %v149 = vcvt.f32.s32.to.zero.pseudo %v117
  %v150 = vcvt.f32.s32.to.zero.pseudo %v118
  %v151 = vcvt.f32.s32.to.zero.pseudo %v119
  %v152 = vlaneseq
  %v153 = vand.u32 %v152, 127
  %v154 = vadd.s32 %v153, 128
  %v155 = vshra.s32 %v153, 6
  %v156 = vshra.s32 %v154, 6
  %v157 = vand.u32 %v153, 63
  %v158 = vand.u32 %v154, 63
  %v159 = vld [vmem:[%s1] sm:$0xff]
  %v160 = vld [vmem:[%s1 + $0x8] sm:$0xff]
  %v161 = vld [vmem:[%s1 + $0x10] sm:$0xff]
  %v162 = vld [vmem:[%s1 + $0x18] sm:$0xff]
  %v163 = vld [vmem:[%s1 + $0x20] sm:$0xff]
  %v164 = vld [vmem:[%s1 + $0x28] sm:$0xff]
  %v165 = vld [vmem:[%s1 + $0x30] sm:$0xff]
  %v166 = vld [vmem:[%s1 + $0x38] sm:$0xff]
  %v167 = vld [vmem:[%s1 + $0x40] sm:$0xff]
  %v168 = vld [vmem:[%s1 + $0x48] sm:$0xff]
  %v169 = vld [vmem:[%s1 + $0x50] sm:$0xff]
  %v170 = vld [vmem:[%s1 + $0x58] sm:$0xff]
  %v171 = vld [vmem:[%s1 + $0x60] sm:$0xff]
  %v172 = vld [vmem:[%s1 + $0x68] sm:$0xff]
  %v173 = vld [vmem:[%s1 + $0x70] sm:$0xff]
  %v174 = vld [vmem:[%s1 + $0x78] sm:$0xff]
  %vm175 = vcmp.eq.s32.totalorder %v155, 0
  %vm176 = vcmp.eq.s32.totalorder %v156, 0
  %v177 = vsel %vm175, 1, 0
  %v178 = vsel %vm176, 1, 0
  %vm179 = vcmp.eq.s32.totalorder %v177, 1
  %vm180 = vcmp.eq.s32.totalorder %v178, 1
  %182 = vset.pattern.permute.xlu0 0
  %183 = vperm.xlu0 %182, %v159
  %v184 = vpop.permute.xlu0 %183
  %187 = vset.pattern.permute.xlu0 0
  %188 = vperm.xlu0 %187, %v160
  %v189 = vpop.permute.xlu0 %188
  %192 = vset.pattern.permute.xlu0 0
  %193 = vperm.xlu0 %192, %v161
  %v194 = vpop.permute.xlu0 %193
  %197 = vset.pattern.permute.xlu0 0
  %198 = vperm.xlu0 %197, %v162
  %v199 = vpop.permute.xlu0 %198
  %202 = vset.pattern.permute.xlu0 0
  %203 = vperm.xlu0 %202, %v163
  %v204 = vpop.permute.xlu0 %203
  %207 = vset.pattern.permute.xlu0 0
  %208 = vperm.xlu0 %207, %v164
  %v209 = vpop.permute.xlu0 %208
  %212 = vset.pattern.permute.xlu0 0
  %213 = vperm.xlu0 %212, %v165
  %v214 = vpop.permute.xlu0 %213
  %217 = vset.pattern.permute.xlu0 0
  %218 = vperm.xlu0 %217, %v166
  %v219 = vpop.permute.xlu0 %218
  %222 = vset.pattern.permute.xlu0 0
  %223 = vperm.xlu0 %222, %v167
  %v224 = vpop.permute.xlu0 %223
  %227 = vset.pattern.permute.xlu0 0
  %228 = vperm.xlu0 %227, %v168
  %v229 = vpop.permute.xlu0 %228
  %232 = vset.pattern.permute.xlu0 0
  %233 = vperm.xlu0 %232, %v169
  %v234 = vpop.permute.xlu0 %233
  %237 = vset.pattern.permute.xlu0 0
  %238 = vperm.xlu0 %237, %v170
  %v239 = vpop.permute.xlu0 %238
  %242 = vset.pattern.permute.xlu0 0
  %243 = vperm.xlu0 %242, %v171
  %v244 = vpop.permute.xlu0 %243
  %247 = vset.pattern.permute.xlu0 0
  %248 = vperm.xlu0 %247, %v172
  %v249 = vpop.permute.xlu0 %248
  %252 = vset.pattern.permute.xlu0 0
  %253 = vperm.xlu0 %252, %v173
  %v254 = vpop.permute.xlu0 %253
  %257 = vset.pattern.permute.xlu0 0
  %258 = vperm.xlu0 %257, %v174
  %v259 = vpop.permute.xlu0 %258
  %v261 = vsel %vm179, %v184, 0.0
  %v262 = vsel %vm180, %v184, 0.0
  %v263 = vsel %vm179, %v189, 0.0
  %v264 = vsel %vm180, %v189, 0.0
  %v265 = vsel %vm179, %v194, 0.0
  %v266 = vsel %vm180, %v194, 0.0
  %v267 = vsel %vm179, %v199, 0.0
  %v268 = vsel %vm180, %v199, 0.0
  %v269 = vsel %vm179, %v204, 0.0
  %v270 = vsel %vm180, %v204, 0.0
  %v271 = vsel %vm179, %v209, 0.0
  %v272 = vsel %vm180, %v209, 0.0
  %v273 = vsel %vm179, %v214, 0.0
  %v274 = vsel %vm180, %v214, 0.0
  %v275 = vsel %vm179, %v219, 0.0
  %v276 = vsel %vm180, %v219, 0.0
  %v277 = vsel %vm179, %v224, 0.0
  %v278 = vsel %vm180, %v224, 0.0
  %v279 = vsel %vm179, %v229, 0.0
  %v280 = vsel %vm180, %v229, 0.0
  %v281 = vsel %vm179, %v234, 0.0
  %v282 = vsel %vm180, %v234, 0.0
  %v283 = vsel %vm179, %v239, 0.0
  %v284 = vsel %vm180, %v239, 0.0
  %v285 = vsel %vm179, %v244, 0.0
  %v286 = vsel %vm180, %v244, 0.0
  %v287 = vsel %vm179, %v249, 0.0
  %v288 = vsel %vm180, %v249, 0.0
  %v289 = vsel %vm179, %v254, 0.0
  %v290 = vsel %vm180, %v254, 0.0
  %v291 = vsel %vm179, %v259, 0.0
  %v292 = vsel %vm180, %v259, 0.0
  %vm293 = vcmp.eq.s32.totalorder %v155, 1
  %vm294 = vcmp.eq.s32.totalorder %v156, 1
  %v295 = vsel %vm293, 1, 0
  %v296 = vsel %vm294, 1, 0
  %vm297 = vcmp.eq.s32.totalorder %v295, 1
  %vm298 = vcmp.eq.s32.totalorder %v296, 1
  %299 = vset.pattern.permute.xlu0 1
  %300 = vperm.xlu0 %299, %v159
  %v301 = vpop.permute.xlu0 %300
  %303 = vset.pattern.permute.xlu0 1
  %304 = vperm.xlu0 %303, %v160
  %v305 = vpop.permute.xlu0 %304
  %307 = vset.pattern.permute.xlu0 1
  %308 = vperm.xlu0 %307, %v161
  %v309 = vpop.permute.xlu0 %308
  %311 = vset.pattern.permute.xlu0 1
  %312 = vperm.xlu0 %311, %v162
  %v313 = vpop.permute.xlu0 %312
  %315 = vset.pattern.permute.xlu0 1
  %316 = vperm.xlu0 %315, %v163
  %v317 = vpop.permute.xlu0 %316
  %319 = vset.pattern.permute.xlu0 1
  %320 = vperm.xlu0 %319, %v164
  %v321 = vpop.permute.xlu0 %320
  %323 = vset.pattern.permute.xlu0 1
  %324 = vperm.xlu0 %323, %v165
  %v325 = vpop.permute.xlu0 %324
  %327 = vset.pattern.permute.xlu0 1
  %328 = vperm.xlu0 %327, %v166
  %v329 = vpop.permute.xlu0 %328
  %331 = vset.pattern.permute.xlu0 1
  %332 = vperm.xlu0 %331, %v167
  %v333 = vpop.permute.xlu0 %332
  %335 = vset.pattern.permute.xlu0 1
  %336 = vperm.xlu0 %335, %v168
  %v337 = vpop.permute.xlu0 %336
  %339 = vset.pattern.permute.xlu0 1
  %340 = vperm.xlu0 %339, %v169
  %v341 = vpop.permute.xlu0 %340
  %343 = vset.pattern.permute.xlu0 1
  %344 = vperm.xlu0 %343, %v170
  %v345 = vpop.permute.xlu0 %344
  %347 = vset.pattern.permute.xlu0 1
  %348 = vperm.xlu0 %347, %v171
  %v349 = vpop.permute.xlu0 %348
  %351 = vset.pattern.permute.xlu0 1
  %352 = vperm.xlu0 %351, %v172
  %v353 = vpop.permute.xlu0 %352
  %355 = vset.pattern.permute.xlu0 1
  %356 = vperm.xlu0 %355, %v173
  %v357 = vpop.permute.xlu0 %356
  %359 = vset.pattern.permute.xlu0 1
  %360 = vperm.xlu0 %359, %v174
  %v361 = vpop.permute.xlu0 %360
  %v363 = vsel %vm297, %v301, %v261
  %v364 = vsel %vm298, %v301, %v262
  %v365 = vsel %vm297, %v305, %v263
  %v366 = vsel %vm298, %v305, %v264
  %v367 = vsel %vm297, %v309, %v265
  %v368 = vsel %vm298, %v309, %v266
  %v369 = vsel %vm297, %v313, %v267
  %v370 = vsel %vm298, %v313, %v268
  %v371 = vsel %vm297, %v317, %v269
  %v372 = vsel %vm298, %v317, %v270
  %v373 = vsel %vm297, %v321, %v271
  %v374 = vsel %vm298, %v321, %v272
  %v375 = vsel %vm297, %v325, %v273
  %v376 = vsel %vm298, %v325, %v274
  %v377 = vsel %vm297, %v329, %v275
  %v378 = vsel %vm298, %v329, %v276
  %v379 = vsel %vm297, %v333, %v277
  %v380 = vsel %vm298, %v333, %v278
  %v381 = vsel %vm297, %v337, %v279
  %v382 = vsel %vm298, %v337, %v280
  %v383 = vsel %vm297, %v341, %v281
  %v384 = vsel %vm298, %v341, %v282
  %v385 = vsel %vm297, %v345, %v283
  %v386 = vsel %vm298, %v345, %v284
  %v387 = vsel %vm297, %v349, %v285
  %v388 = vsel %vm298, %v349, %v286
  %v389 = vsel %vm297, %v353, %v287
  %v390 = vsel %vm298, %v353, %v288
  %v391 = vsel %vm297, %v357, %v289
  %v392 = vsel %vm298, %v357, %v290
  %v393 = vsel %vm297, %v361, %v291
  %v394 = vsel %vm298, %v361, %v292
  %vm395 = vcmp.eq.s32.totalorder %v155, 2
  %vm396 = vcmp.eq.s32.totalorder %v156, 2
  %v397 = vsel %vm395, 1, 0
  %v398 = vsel %vm396, 1, 0
  %vm399 = vcmp.eq.s32.totalorder %v397, 1
  %vm400 = vcmp.eq.s32.totalorder %v398, 1
  %401 = vset.pattern.permute.xlu0 2
  %402 = vperm.xlu0 %401, %v159
  %v403 = vpop.permute.xlu0 %402
  %405 = vset.pattern.permute.xlu0 2
  %406 = vperm.xlu0 %405, %v160
  %v407 = vpop.permute.xlu0 %406
  %409 = vset.pattern.permute.xlu0 2
  %410 = vperm.xlu0 %409, %v161
  %v411 = vpop.permute.xlu0 %410
  %413 = vset.pattern.permute.xlu0 2
  %414 = vperm.xlu0 %413, %v162
  %v415 = vpop.permute.xlu0 %414
  %417 = vset.pattern.permute.xlu0 2
  %418 = vperm.xlu0 %417, %v163
  %v419 = vpop.permute.xlu0 %418
  %421 = vset.pattern.permute.xlu0 2
  %422 = vperm.xlu0 %421, %v164
  %v423 = vpop.permute.xlu0 %422
  %425 = vset.pattern.permute.xlu0 2
  %426 = vperm.xlu0 %425, %v165
  %v427 = vpop.permute.xlu0 %426
  %429 = vset.pattern.permute.xlu0 2
  %430 = vperm.xlu0 %429, %v166
  %v431 = vpop.permute.xlu0 %430
  %433 = vset.pattern.permute.xlu0 2
  %434 = vperm.xlu0 %433, %v167
  %v435 = vpop.permute.xlu0 %434
  %437 = vset.pattern.permute.xlu0 2
  %438 = vperm.xlu0 %437, %v168
  %v439 = vpop.permute.xlu0 %438
  %441 = vset.pattern.permute.xlu0 2
  %442 = vperm.xlu0 %441, %v169
  %v443 = vpop.permute.xlu0 %442
  %445 = vset.pattern.permute.xlu0 2
  %446 = vperm.xlu0 %445, %v170
  %v447 = vpop.permute.xlu0 %446
  %449 = vset.pattern.permute.xlu0 2
  %450 = vperm.xlu0 %449, %v171
  %v451 = vpop.permute.xlu0 %450
  %453 = vset.pattern.permute.xlu0 2
  %454 = vperm.xlu0 %453, %v172
  %v455 = vpop.permute.xlu0 %454
  %457 = vset.pattern.permute.xlu0 2
  %458 = vperm.xlu0 %457, %v173
  %v459 = vpop.permute.xlu0 %458
  %461 = vset.pattern.permute.xlu0 2
  %462 = vperm.xlu0 %461, %v174
  %v463 = vpop.permute.xlu0 %462
  %v465 = vsel %vm399, %v403, %v363
  %v466 = vsel %vm400, %v403, %v364
  %v467 = vsel %vm399, %v407, %v365
  %v468 = vsel %vm400, %v407, %v366
  %v469 = vsel %vm399, %v411, %v367
  %v470 = vsel %vm400, %v411, %v368
  %v471 = vsel %vm399, %v415, %v369
  %v472 = vsel %vm400, %v415, %v370
  %v473 = vsel %vm399, %v419, %v371
  %v474 = vsel %vm400, %v419, %v372
  %v475 = vsel %vm399, %v423, %v373
  %v476 = vsel %vm400, %v423, %v374
  %v477 = vsel %vm399, %v427, %v375
  %v478 = vsel %vm400, %v427, %v376
  %v479 = vsel %vm399, %v431, %v377
  %v480 = vsel %vm400, %v431, %v378
  %v481 = vsel %vm399, %v435, %v379
  %v482 = vsel %vm400, %v435, %v380
  %v483 = vsel %vm399, %v439, %v381
  %v484 = vsel %vm400, %v439, %v382
  %v485 = vsel %vm399, %v443, %v383
  %v486 = vsel %vm400, %v443, %v384
  %v487 = vsel %vm399, %v447, %v385
  %v488 = vsel %vm400, %v447, %v386
  %v489 = vsel %vm399, %v451, %v387
  %v490 = vsel %vm400, %v451, %v388
  %v491 = vsel %vm399, %v455, %v389
  %v492 = vsel %vm400, %v455, %v390
  %v493 = vsel %vm399, %v459, %v391
  %v494 = vsel %vm400, %v459, %v392
  %v495 = vsel %vm399, %v463, %v393
  %v496 = vsel %vm400, %v463, %v394
  %vm497 = vcmp.eq.s32.totalorder %v155, 3
  %vm498 = vcmp.eq.s32.totalorder %v156, 3
  %v499 = vsel %vm497, 1, 0
  %v500 = vsel %vm498, 1, 0
  %vm501 = vcmp.eq.s32.totalorder %v499, 1
  %vm502 = vcmp.eq.s32.totalorder %v500, 1
  %503 = vset.pattern.permute.xlu0 3
  %504 = vperm.xlu0 %503, %v159
  %v505 = vpop.permute.xlu0 %504
  %507 = vset.pattern.permute.xlu0 3
  %508 = vperm.xlu0 %507, %v160
  %v509 = vpop.permute.xlu0 %508
  %511 = vset.pattern.permute.xlu0 3
  %512 = vperm.xlu0 %511, %v161
  %v513 = vpop.permute.xlu0 %512
  %515 = vset.pattern.permute.xlu0 3
  %516 = vperm.xlu0 %515, %v162
  %v517 = vpop.permute.xlu0 %516
  %519 = vset.pattern.permute.xlu0 3
  %520 = vperm.xlu0 %519, %v163
  %v521 = vpop.permute.xlu0 %520
  %523 = vset.pattern.permute.xlu0 3
  %524 = vperm.xlu0 %523, %v164
  %v525 = vpop.permute.xlu0 %524
  %527 = vset.pattern.permute.xlu0 3
  %528 = vperm.xlu0 %527, %v165
  %v529 = vpop.permute.xlu0 %528
  %531 = vset.pattern.permute.xlu0 3
  %532 = vperm.xlu0 %531, %v166
  %v533 = vpop.permute.xlu0 %532
  %535 = vset.pattern.permute.xlu0 3
  %536 = vperm.xlu0 %535, %v167
  %v537 = vpop.permute.xlu0 %536
  %539 = vset.pattern.permute.xlu0 3
  %540 = vperm.xlu0 %539, %v168
  %v541 = vpop.permute.xlu0 %540
  %543 = vset.pattern.permute.xlu0 3
  %544 = vperm.xlu0 %543, %v169
  %v545 = vpop.permute.xlu0 %544
  %547 = vset.pattern.permute.xlu0 3
  %548 = vperm.xlu0 %547, %v170
  %v549 = vpop.permute.xlu0 %548
  %551 = vset.pattern.permute.xlu0 3
  %552 = vperm.xlu0 %551, %v171
  %v553 = vpop.permute.xlu0 %552
  %555 = vset.pattern.permute.xlu0 3
  %556 = vperm.xlu0 %555, %v172
  %v557 = vpop.permute.xlu0 %556
  %559 = vset.pattern.permute.xlu0 3
  %560 = vperm.xlu0 %559, %v173
  %v561 = vpop.permute.xlu0 %560
  %563 = vset.pattern.permute.xlu0 3
  %564 = vperm.xlu0 %563, %v174
  %v565 = vpop.permute.xlu0 %564
  %v567 = vsel %vm501, %v505, %v465
  %v568 = vsel %vm502, %v505, %v466
  %v569 = vsel %vm501, %v509, %v467
  %v570 = vsel %vm502, %v509, %v468
  %v571 = vsel %vm501, %v513, %v469
  %v572 = vsel %vm502, %v513, %v470
  %v573 = vsel %vm501, %v517, %v471
  %v574 = vsel %vm502, %v517, %v472
  %v575 = vsel %vm501, %v521, %v473
  %v576 = vsel %vm502, %v521, %v474
  %v577 = vsel %vm501, %v525, %v475
  %v578 = vsel %vm502, %v525, %v476
  %v579 = vsel %vm501, %v529, %v477
  %v580 = vsel %vm502, %v529, %v478
  %v581 = vsel %vm501, %v533, %v479
  %v582 = vsel %vm502, %v533, %v480
  %v583 = vsel %vm501, %v537, %v481
  %v584 = vsel %vm502, %v537, %v482
  %v585 = vsel %vm501, %v541, %v483
  %v586 = vsel %vm502, %v541, %v484
  %v587 = vsel %vm501, %v545, %v485
  %v588 = vsel %vm502, %v545, %v486
  %v589 = vsel %vm501, %v549, %v487
  %v590 = vsel %vm502, %v549, %v488
  %v591 = vsel %vm501, %v553, %v489
  %v592 = vsel %vm502, %v553, %v490
  %v593 = vsel %vm501, %v557, %v491
  %v594 = vsel %vm502, %v557, %v492
  %v595 = vsel %vm501, %v561, %v493
  %v596 = vsel %vm502, %v561, %v494
  %v597 = vsel %vm501, %v565, %v495
  %v598 = vsel %vm502, %v565, %v496
  %v599 = vand.u32 %v157, 3
  %v600 = vand.u32 %v158, 3
  %v601 = vadd.s32 %v136, 1
  %v602 = vadd.s32 %v137, 1
  %v603 = vadd.s32 %v138, 1
  %v604 = vadd.s32 %v139, 1
  %v605 = vadd.s32 %v140, 1
  %v606 = vadd.s32 %v141, 1
  %v607 = vadd.s32 %v142, 1
  %v608 = vadd.s32 %v143, 1
  %v609 = vadd.s32 %v144, 1
  %v610 = vadd.s32 %v145, 1
  %v611 = vadd.s32 %v146, 1
  %v612 = vadd.s32 %v147, 1
  %v613 = vadd.s32 %v148, 1
  %v614 = vadd.s32 %v149, 1
  %v615 = vadd.s32 %v150, 1
  %v616 = vadd.s32 %v151, 1
  %vm617 = vcmp.ge.s32.totalorder %v601, 4
  %vm618 = vcmp.ge.s32.totalorder %v602, 4
  %vm619 = vcmp.ge.s32.totalorder %v603, 4
  %vm620 = vcmp.ge.s32.totalorder %v604, 4
  %vm621 = vcmp.ge.s32.totalorder %v605, 4
  %vm622 = vcmp.ge.s32.totalorder %v606, 4
  %vm623 = vcmp.ge.s32.totalorder %v607, 4
  %vm624 = vcmp.ge.s32.totalorder %v608, 4
  %vm625 = vcmp.ge.s32.totalorder %v609, 4
  %vm626 = vcmp.ge.s32.totalorder %v610, 4
  %vm627 = vcmp.ge.s32.totalorder %v611, 4
  %vm628 = vcmp.ge.s32.totalorder %v612, 4
  %vm629 = vcmp.ge.s32.totalorder %v613, 4
  %vm630 = vcmp.ge.s32.totalorder %v614, 4
  %vm631 = vcmp.ge.s32.totalorder %v615, 4
  %vm632 = vcmp.ge.s32.totalorder %v616, 4
  %v633 = vsub.s32 %v601, 4
  %v634 = vsub.s32 %v602, 4
  %v635 = vsub.s32 %v603, 4
  %v636 = vsub.s32 %v604, 4
  %v637 = vsub.s32 %v605, 4
  %v638 = vsub.s32 %v606, 4
  %v639 = vsub.s32 %v607, 4
  %v640 = vsub.s32 %v608, 4
  %v641 = vsub.s32 %v609, 4
  %v642 = vsub.s32 %v610, 4
  %v643 = vsub.s32 %v611, 4
  %v644 = vsub.s32 %v612, 4
  %v645 = vsub.s32 %v613, 4
  %v646 = vsub.s32 %v614, 4
  %v647 = vsub.s32 %v615, 4
  %v648 = vsub.s32 %v616, 4
  %v649 = vsel %vm617, %v633, %v601
  %v650 = vsel %vm618, %v634, %v602
  %v651 = vsel %vm619, %v635, %v603
  %v652 = vsel %vm620, %v636, %v604
  %v653 = vsel %vm621, %v637, %v605
  %v654 = vsel %vm622, %v638, %v606
  %v655 = vsel %vm623, %v639, %v607
  %v656 = vsel %vm624, %v640, %v608
  %v657 = vsel %vm625, %v641, %v609
  %v658 = vsel %vm626, %v642, %v610
  %v659 = vsel %vm627, %v643, %v611
  %v660 = vsel %vm628, %v644, %v612
  %v661 = vsel %vm629, %v645, %v613
  %v662 = vsel %vm630, %v646, %v614
  %v663 = vsel %vm631, %v647, %v615
  %v664 = vsel %vm632, %v648, %v616
  %665 = vset.pattern.permute.xlu0 0
  %666 = vperm.xlu0 %665, %v136
  %v667 = vpop.permute.xlu0 %666
  %668 = vset.pattern.permute.xlu0 0
  %669 = vperm.xlu0 %668, %v137
  %v670 = vpop.permute.xlu0 %669
  %671 = vset.pattern.permute.xlu0 0
  %672 = vperm.xlu0 %671, %v138
  %v673 = vpop.permute.xlu0 %672
  %674 = vset.pattern.permute.xlu0 0
  %675 = vperm.xlu0 %674, %v139
  %v676 = vpop.permute.xlu0 %675
  %677 = vset.pattern.permute.xlu0 0
  %678 = vperm.xlu0 %677, %v140
  %v679 = vpop.permute.xlu0 %678
  %680 = vset.pattern.permute.xlu0 0
  %681 = vperm.xlu0 %680, %v141
  %v682 = vpop.permute.xlu0 %681
  %683 = vset.pattern.permute.xlu0 0
  %684 = vperm.xlu0 %683, %v142
  %v685 = vpop.permute.xlu0 %684
  %686 = vset.pattern.permute.xlu0 0
  %687 = vperm.xlu0 %686, %v143
  %v688 = vpop.permute.xlu0 %687
  %689 = vset.pattern.permute.xlu0 0
  %690 = vperm.xlu0 %689, %v144
  %v691 = vpop.permute.xlu0 %690
  %692 = vset.pattern.permute.xlu0 0
  %693 = vperm.xlu0 %692, %v145
  %v694 = vpop.permute.xlu0 %693
  %695 = vset.pattern.permute.xlu0 0
  %696 = vperm.xlu0 %695, %v146
  %v697 = vpop.permute.xlu0 %696
  %698 = vset.pattern.permute.xlu0 0
  %699 = vperm.xlu0 %698, %v147
  %v700 = vpop.permute.xlu0 %699
  %701 = vset.pattern.permute.xlu0 0
  %702 = vperm.xlu0 %701, %v148
  %v703 = vpop.permute.xlu0 %702
  %704 = vset.pattern.permute.xlu0 0
  %705 = vperm.xlu0 %704, %v149
  %v706 = vpop.permute.xlu0 %705
  %707 = vset.pattern.permute.xlu0 0
  %708 = vperm.xlu0 %707, %v150
  %v709 = vpop.permute.xlu0 %708
  %710 = vset.pattern.permute.xlu0 0
  %711 = vperm.xlu0 %710, %v151
  %v712 = vpop.permute.xlu0 %711
  %vm713 = vcmp.eq.s32.totalorder %v599, %v667
  %vm714 = vcmp.eq.s32.totalorder %v600, %v667
  %vm715 = vcmp.eq.s32.totalorder %v599, %v670
  %vm716 = vcmp.eq.s32.totalorder %v600, %v670
  %vm717 = vcmp.eq.s32.totalorder %v599, %v673
  %vm718 = vcmp.eq.s32.totalorder %v600, %v673
  %vm719 = vcmp.eq.s32.totalorder %v599, %v676
  %vm720 = vcmp.eq.s32.totalorder %v600, %v676
  %vm721 = vcmp.eq.s32.totalorder %v599, %v679
  %vm722 = vcmp.eq.s32.totalorder %v600, %v679
  %vm723 = vcmp.eq.s32.totalorder %v599, %v682
  %vm724 = vcmp.eq.s32.totalorder %v600, %v682
  %vm725 = vcmp.eq.s32.totalorder %v599, %v685
  %vm726 = vcmp.eq.s32.totalorder %v600, %v685
  %vm727 = vcmp.eq.s32.totalorder %v599, %v688
  %vm728 = vcmp.eq.s32.totalorder %v600, %v688
  %vm729 = vcmp.eq.s32.totalorder %v599, %v691
  %vm730 = vcmp.eq.s32.totalorder %v600, %v691
  %vm731 = vcmp.eq.s32.totalorder %v599, %v694
  %vm732 = vcmp.eq.s32.totalorder %v600, %v694
  %vm733 = vcmp.eq.s32.totalorder %v599, %v697
  %vm734 = vcmp.eq.s32.totalorder %v600, %v697
  %vm735 = vcmp.eq.s32.totalorder %v599, %v700
  %vm736 = vcmp.eq.s32.totalorder %v600, %v700
  %vm737 = vcmp.eq.s32.totalorder %v599, %v703
  %vm738 = vcmp.eq.s32.totalorder %v600, %v703
  %vm739 = vcmp.eq.s32.totalorder %v599, %v706
  %vm740 = vcmp.eq.s32.totalorder %v600, %v706
  %vm741 = vcmp.eq.s32.totalorder %v599, %v709
  %vm742 = vcmp.eq.s32.totalorder %v600, %v709
  %vm743 = vcmp.eq.s32.totalorder %v599, %v712
  %vm744 = vcmp.eq.s32.totalorder %v600, %v712
  %v745 = vsub.f32 1.0, %v120
  %v746 = vsub.f32 1.0, %v121
  %v747 = vsub.f32 1.0, %v122
  %v748 = vsub.f32 1.0, %v123
  %v749 = vsub.f32 1.0, %v124
  %v750 = vsub.f32 1.0, %v125
  %v751 = vsub.f32 1.0, %v126
  %v752 = vsub.f32 1.0, %v127
  %v753 = vsub.f32 1.0, %v128
  %v754 = vsub.f32 1.0, %v129
  %v755 = vsub.f32 1.0, %v130
  %v756 = vsub.f32 1.0, %v131
  %v757 = vsub.f32 1.0, %v132
  %v758 = vsub.f32 1.0, %v133
  %v759 = vsub.f32 1.0, %v134
  %v760 = vsub.f32 1.0, %v135
  %762 = vset.pattern.permute.xlu0 0
  %763 = vperm.xlu0 %762, %v745
  %v764 = vpop.permute.xlu0 %763
  %767 = vset.pattern.permute.xlu0 0
  %768 = vperm.xlu0 %767, %v746
  %v769 = vpop.permute.xlu0 %768
  %772 = vset.pattern.permute.xlu0 0
  %773 = vperm.xlu0 %772, %v747
  %v774 = vpop.permute.xlu0 %773
  %777 = vset.pattern.permute.xlu0 0
  %778 = vperm.xlu0 %777, %v748
  %v779 = vpop.permute.xlu0 %778
  %782 = vset.pattern.permute.xlu0 0
  %783 = vperm.xlu0 %782, %v749
  %v784 = vpop.permute.xlu0 %783
  %787 = vset.pattern.permute.xlu0 0
  %788 = vperm.xlu0 %787, %v750
  %v789 = vpop.permute.xlu0 %788
  %792 = vset.pattern.permute.xlu0 0
  %793 = vperm.xlu0 %792, %v751
  %v794 = vpop.permute.xlu0 %793
  %797 = vset.pattern.permute.xlu0 0
  %798 = vperm.xlu0 %797, %v752
  %v799 = vpop.permute.xlu0 %798
  %802 = vset.pattern.permute.xlu0 0
  %803 = vperm.xlu0 %802, %v753
  %v804 = vpop.permute.xlu0 %803
  %807 = vset.pattern.permute.xlu0 0
  %808 = vperm.xlu0 %807, %v754
  %v809 = vpop.permute.xlu0 %808
  %812 = vset.pattern.permute.xlu0 0
  %813 = vperm.xlu0 %812, %v755
  %v814 = vpop.permute.xlu0 %813
  %817 = vset.pattern.permute.xlu0 0
  %818 = vperm.xlu0 %817, %v756
  %v819 = vpop.permute.xlu0 %818
  %822 = vset.pattern.permute.xlu0 0
  %823 = vperm.xlu0 %822, %v757
  %v824 = vpop.permute.xlu0 %823
  %827 = vset.pattern.permute.xlu0 0
  %828 = vperm.xlu0 %827, %v758
  %v829 = vpop.permute.xlu0 %828
  %832 = vset.pattern.permute.xlu0 0
  %833 = vperm.xlu0 %832, %v759
  %v834 = vpop.permute.xlu0 %833
  %837 = vset.pattern.permute.xlu0 0
  %838 = vperm.xlu0 %837, %v760
  %v839 = vpop.permute.xlu0 %838
  %v841 = vsel %vm713, %v764, 0.0
  %v842 = vsel %vm714, %v764, 0.0
  %v843 = vsel %vm715, %v769, 0.0
  %v844 = vsel %vm716, %v769, 0.0
  %v845 = vsel %vm717, %v774, 0.0
  %v846 = vsel %vm718, %v774, 0.0
  %v847 = vsel %vm719, %v779, 0.0
  %v848 = vsel %vm720, %v779, 0.0
  %v849 = vsel %vm721, %v784, 0.0
  %v850 = vsel %vm722, %v784, 0.0
  %v851 = vsel %vm723, %v789, 0.0
  %v852 = vsel %vm724, %v789, 0.0
  %v853 = vsel %vm725, %v794, 0.0
  %v854 = vsel %vm726, %v794, 0.0
  %v855 = vsel %vm727, %v799, 0.0
  %v856 = vsel %vm728, %v799, 0.0
  %v857 = vsel %vm729, %v804, 0.0
  %v858 = vsel %vm730, %v804, 0.0
  %v859 = vsel %vm731, %v809, 0.0
  %v860 = vsel %vm732, %v809, 0.0
  %v861 = vsel %vm733, %v814, 0.0
  %v862 = vsel %vm734, %v814, 0.0
  %v863 = vsel %vm735, %v819, 0.0
  %v864 = vsel %vm736, %v819, 0.0
  %v865 = vsel %vm737, %v824, 0.0
  %v866 = vsel %vm738, %v824, 0.0
  %v867 = vsel %vm739, %v829, 0.0
  %v868 = vsel %vm740, %v829, 0.0
  %v869 = vsel %vm741, %v834, 0.0
  %v870 = vsel %vm742, %v834, 0.0
  %v871 = vsel %vm743, %v839, 0.0
  %v872 = vsel %vm744, %v839, 0.0
  %873 = vset.pattern.permute.xlu0 0
  %874 = vperm.xlu0 %873, %v649
  %v875 = vpop.permute.xlu0 %874
  %876 = vset.pattern.permute.xlu0 0
  %877 = vperm.xlu0 %876, %v650
  %v878 = vpop.permute.xlu0 %877
  %879 = vset.pattern.permute.xlu0 0
  %880 = vperm.xlu0 %879, %v651
  %v881 = vpop.permute.xlu0 %880
  %882 = vset.pattern.permute.xlu0 0
  %883 = vperm.xlu0 %882, %v652
  %v884 = vpop.permute.xlu0 %883
  %885 = vset.pattern.permute.xlu0 0
  %886 = vperm.xlu0 %885, %v653
  %v887 = vpop.permute.xlu0 %886
  %888 = vset.pattern.permute.xlu0 0
  %889 = vperm.xlu0 %888, %v654
  %v890 = vpop.permute.xlu0 %889
  %891 = vset.pattern.permute.xlu0 0
  %892 = vperm.xlu0 %891, %v655
  %v893 = vpop.permute.xlu0 %892
  %894 = vset.pattern.permute.xlu0 0
  %895 = vperm.xlu0 %894, %v656
  %v896 = vpop.permute.xlu0 %895
  %897 = vset.pattern.permute.xlu0 0
  %898 = vperm.xlu0 %897, %v657
  %v899 = vpop.permute.xlu0 %898
  %900 = vset.pattern.permute.xlu0 0
  %901 = vperm.xlu0 %900, %v658
  %v902 = vpop.permute.xlu0 %901
  %903 = vset.pattern.permute.xlu0 0
  %904 = vperm.xlu0 %903, %v659
  %v905 = vpop.permute.xlu0 %904
  %906 = vset.pattern.permute.xlu0 0
  %907 = vperm.xlu0 %906, %v660
  %v908 = vpop.permute.xlu0 %907
  %909 = vset.pattern.permute.xlu0 0
  %910 = vperm.xlu0 %909, %v661
  %v911 = vpop.permute.xlu0 %910
  %912 = vset.pattern.permute.xlu0 0
  %913 = vperm.xlu0 %912, %v662
  %v914 = vpop.permute.xlu0 %913
  %915 = vset.pattern.permute.xlu0 0
  %916 = vperm.xlu0 %915, %v663
  %v917 = vpop.permute.xlu0 %916
  %918 = vset.pattern.permute.xlu0 0
  %919 = vperm.xlu0 %918, %v664
  %v920 = vpop.permute.xlu0 %919
  %vm921 = vcmp.eq.s32.totalorder %v599, %v875
  %vm922 = vcmp.eq.s32.totalorder %v600, %v875
  %vm923 = vcmp.eq.s32.totalorder %v599, %v878
  %vm924 = vcmp.eq.s32.totalorder %v600, %v878
  %vm925 = vcmp.eq.s32.totalorder %v599, %v881
  %vm926 = vcmp.eq.s32.totalorder %v600, %v881
  %vm927 = vcmp.eq.s32.totalorder %v599, %v884
  %vm928 = vcmp.eq.s32.totalorder %v600, %v884
  %vm929 = vcmp.eq.s32.totalorder %v599, %v887
  %vm930 = vcmp.eq.s32.totalorder %v600, %v887
  %vm931 = vcmp.eq.s32.totalorder %v599, %v890
  %vm932 = vcmp.eq.s32.totalorder %v600, %v890
  %vm933 = vcmp.eq.s32.totalorder %v599, %v893
  %vm934 = vcmp.eq.s32.totalorder %v600, %v893
  %vm935 = vcmp.eq.s32.totalorder %v599, %v896
  %vm936 = vcmp.eq.s32.totalorder %v600, %v896
  %vm937 = vcmp.eq.s32.totalorder %v599, %v899
  %vm938 = vcmp.eq.s32.totalorder %v600, %v899
  %vm939 = vcmp.eq.s32.totalorder %v599, %v902
  %vm940 = vcmp.eq.s32.totalorder %v600, %v902
  %vm941 = vcmp.eq.s32.totalorder %v599, %v905
  %vm942 = vcmp.eq.s32.totalorder %v600, %v905
  %vm943 = vcmp.eq.s32.totalorder %v599, %v908
  %vm944 = vcmp.eq.s32.totalorder %v600, %v908
  %vm945 = vcmp.eq.s32.totalorder %v599, %v911
  %vm946 = vcmp.eq.s32.totalorder %v600, %v911
  %vm947 = vcmp.eq.s32.totalorder %v599, %v914
  %vm948 = vcmp.eq.s32.totalorder %v600, %v914
  %vm949 = vcmp.eq.s32.totalorder %v599, %v917
  %vm950 = vcmp.eq.s32.totalorder %v600, %v917
  %vm951 = vcmp.eq.s32.totalorder %v599, %v920
  %vm952 = vcmp.eq.s32.totalorder %v600, %v920
  %954 = vset.pattern.permute.xlu0 0
  %955 = vperm.xlu0 %954, %v120
  %v956 = vpop.permute.xlu0 %955
  %959 = vset.pattern.permute.xlu0 0
  %960 = vperm.xlu0 %959, %v121
  %v961 = vpop.permute.xlu0 %960
  %964 = vset.pattern.permute.xlu0 0
  %965 = vperm.xlu0 %964, %v122
  %v966 = vpop.permute.xlu0 %965
  %969 = vset.pattern.permute.xlu0 0
  %970 = vperm.xlu0 %969, %v123
  %v971 = vpop.permute.xlu0 %970
  %974 = vset.pattern.permute.xlu0 0
  %975 = vperm.xlu0 %974, %v124
  %v976 = vpop.permute.xlu0 %975
  %979 = vset.pattern.permute.xlu0 0
  %980 = vperm.xlu0 %979, %v125
  %v981 = vpop.permute.xlu0 %980
  %984 = vset.pattern.permute.xlu0 0
  %985 = vperm.xlu0 %984, %v126
  %v986 = vpop.permute.xlu0 %985
  %989 = vset.pattern.permute.xlu0 0
  %990 = vperm.xlu0 %989, %v127
  %v991 = vpop.permute.xlu0 %990
  %994 = vset.pattern.permute.xlu0 0
  %995 = vperm.xlu0 %994, %v128
  %v996 = vpop.permute.xlu0 %995
  %999 = vset.pattern.permute.xlu0 0
  %1000 = vperm.xlu0 %999, %v129
  %v1001 = vpop.permute.xlu0 %1000
  %1004 = vset.pattern.permute.xlu0 0
  %1005 = vperm.xlu0 %1004, %v130
  %v1006 = vpop.permute.xlu0 %1005
  %1009 = vset.pattern.permute.xlu0 0
  %1010 = vperm.xlu0 %1009, %v131
  %v1011 = vpop.permute.xlu0 %1010
  %1014 = vset.pattern.permute.xlu0 0
  %1015 = vperm.xlu0 %1014, %v132
  %v1016 = vpop.permute.xlu0 %1015
  %1019 = vset.pattern.permute.xlu0 0
  %1020 = vperm.xlu0 %1019, %v133
  %v1021 = vpop.permute.xlu0 %1020
  %1024 = vset.pattern.permute.xlu0 0
  %1025 = vperm.xlu0 %1024, %v134
  %v1026 = vpop.permute.xlu0 %1025
  %1029 = vset.pattern.permute.xlu0 0
  %1030 = vperm.xlu0 %1029, %v135
  %v1031 = vpop.permute.xlu0 %1030
  %v1033 = vsel %vm921, %v956, 0.0
  %v1034 = vsel %vm922, %v956, 0.0
  %v1035 = vsel %vm923, %v961, 0.0
  %v1036 = vsel %vm924, %v961, 0.0
  %v1037 = vsel %vm925, %v966, 0.0
  %v1038 = vsel %vm926, %v966, 0.0
  %v1039 = vsel %vm927, %v971, 0.0
  %v1040 = vsel %vm928, %v971, 0.0
  %v1041 = vsel %vm929, %v976, 0.0
  %v1042 = vsel %vm930, %v976, 0.0
  %v1043 = vsel %vm931, %v981, 0.0
  %v1044 = vsel %vm932, %v981, 0.0
  %v1045 = vsel %vm933, %v986, 0.0
  %v1046 = vsel %vm934, %v986, 0.0
  %v1047 = vsel %vm935, %v991, 0.0
  %v1048 = vsel %vm936, %v991, 0.0
  %v1049 = vsel %vm937, %v996, 0.0
  %v1050 = vsel %vm938, %v996, 0.0
  %v1051 = vsel %vm939, %v1001, 0.0
  %v1052 = vsel %vm940, %v1001, 0.0
  %v1053 = vsel %vm941, %v1006, 0.0
  %v1054 = vsel %vm942, %v1006, 0.0
  %v1055 = vsel %vm943, %v1011, 0.0
  %v1056 = vsel %vm944, %v1011, 0.0
  %v1057 = vsel %vm945, %v1016, 0.0
  %v1058 = vsel %vm946, %v1016, 0.0
  %v1059 = vsel %vm947, %v1021, 0.0
  %v1060 = vsel %vm948, %v1021, 0.0
  %v1061 = vsel %vm949, %v1026, 0.0
  %v1062 = vsel %vm950, %v1026, 0.0
  %v1063 = vsel %vm951, %v1031, 0.0
  %v1064 = vsel %vm952, %v1031, 0.0
  %v1065 = vadd.f32 %v841, %v1033
  %v1066 = vadd.f32 %v842, %v1034
  %v1067 = vadd.f32 %v843, %v1035
  %v1068 = vadd.f32 %v844, %v1036
  %v1069 = vadd.f32 %v845, %v1037
  %v1070 = vadd.f32 %v846, %v1038
  %v1071 = vadd.f32 %v847, %v1039
  %v1072 = vadd.f32 %v848, %v1040
  %v1073 = vadd.f32 %v849, %v1041
  %v1074 = vadd.f32 %v850, %v1042
  %v1075 = vadd.f32 %v851, %v1043
  %v1076 = vadd.f32 %v852, %v1044
  %v1077 = vadd.f32 %v853, %v1045
  %v1078 = vadd.f32 %v854, %v1046
  %v1079 = vadd.f32 %v855, %v1047
  %v1080 = vadd.f32 %v856, %v1048
  %v1081 = vadd.f32 %v857, %v1049
  %v1082 = vadd.f32 %v858, %v1050
  %v1083 = vadd.f32 %v859, %v1051
  %v1084 = vadd.f32 %v860, %v1052
  %v1085 = vadd.f32 %v861, %v1053
  %v1086 = vadd.f32 %v862, %v1054
  %v1087 = vadd.f32 %v863, %v1055
  %v1088 = vadd.f32 %v864, %v1056
  %v1089 = vadd.f32 %v865, %v1057
  %v1090 = vadd.f32 %v866, %v1058
  %v1091 = vadd.f32 %v867, %v1059
  %v1092 = vadd.f32 %v868, %v1060
  %v1093 = vadd.f32 %v869, %v1061
  %v1094 = vadd.f32 %v870, %v1062
  %v1095 = vadd.f32 %v871, %v1063
  %v1096 = vadd.f32 %v872, %v1064
  %v1097 = vmul.f32 %v567, %v1065
  %v1098 = vmul.f32 %v568, %v1066
  %v1099 = vmul.f32 %v569, %v1067
  %v1100 = vmul.f32 %v570, %v1068
  %v1101 = vmul.f32 %v571, %v1069
  %v1102 = vmul.f32 %v572, %v1070
  %v1103 = vmul.f32 %v573, %v1071
  %v1104 = vmul.f32 %v574, %v1072
  %v1105 = vmul.f32 %v575, %v1073
  %v1106 = vmul.f32 %v576, %v1074
  %v1107 = vmul.f32 %v577, %v1075
  %v1108 = vmul.f32 %v578, %v1076
  %v1109 = vmul.f32 %v579, %v1077
  %v1110 = vmul.f32 %v580, %v1078
  %v1111 = vmul.f32 %v581, %v1079
  %v1112 = vmul.f32 %v582, %v1080
  %v1113 = vmul.f32 %v583, %v1081
  %v1114 = vmul.f32 %v584, %v1082
  %v1115 = vmul.f32 %v585, %v1083
  %v1116 = vmul.f32 %v586, %v1084
  %v1117 = vmul.f32 %v587, %v1085
  %v1118 = vmul.f32 %v588, %v1086
  %v1119 = vmul.f32 %v589, %v1087
  %v1120 = vmul.f32 %v590, %v1088
  %v1121 = vmul.f32 %v591, %v1089
  %v1122 = vmul.f32 %v592, %v1090
  %v1123 = vmul.f32 %v593, %v1091
  %v1124 = vmul.f32 %v594, %v1092
  %v1125 = vmul.f32 %v595, %v1093
  %v1126 = vmul.f32 %v596, %v1094
  %v1127 = vmul.f32 %v597, %v1095
  %v1128 = vmul.f32 %v598, %v1096
  %v1129 = vshra.s32 %v157, 2
  %v1130 = vshra.s32 %v158, 2
  %v1131 = vand.u32 %v1129, 3
  %v1132 = vand.u32 %v1130, 3
  %1133 = vset.pattern.permute.xlu0 1
  %1134 = vperm.xlu0 %1133, %v136
  %v1135 = vpop.permute.xlu0 %1134
  %1136 = vset.pattern.permute.xlu0 1
  %1137 = vperm.xlu0 %1136, %v137
  %v1138 = vpop.permute.xlu0 %1137
  %1139 = vset.pattern.permute.xlu0 1
  %1140 = vperm.xlu0 %1139, %v138
  %v1141 = vpop.permute.xlu0 %1140
  %1142 = vset.pattern.permute.xlu0 1
  %1143 = vperm.xlu0 %1142, %v139
  %v1144 = vpop.permute.xlu0 %1143
  %1145 = vset.pattern.permute.xlu0 1
  %1146 = vperm.xlu0 %1145, %v140
  %v1147 = vpop.permute.xlu0 %1146
  %1148 = vset.pattern.permute.xlu0 1
  %1149 = vperm.xlu0 %1148, %v141
  %v1150 = vpop.permute.xlu0 %1149
  %1151 = vset.pattern.permute.xlu0 1
  %1152 = vperm.xlu0 %1151, %v142
  %v1153 = vpop.permute.xlu0 %1152
  %1154 = vset.pattern.permute.xlu0 1
  %1155 = vperm.xlu0 %1154, %v143
  %v1156 = vpop.permute.xlu0 %1155
  %1157 = vset.pattern.permute.xlu0 1
  %1158 = vperm.xlu0 %1157, %v144
  %v1159 = vpop.permute.xlu0 %1158
  %1160 = vset.pattern.permute.xlu0 1
  %1161 = vperm.xlu0 %1160, %v145
  %v1162 = vpop.permute.xlu0 %1161
  %1163 = vset.pattern.permute.xlu0 1
  %1164 = vperm.xlu0 %1163, %v146
  %v1165 = vpop.permute.xlu0 %1164
  %1166 = vset.pattern.permute.xlu0 1
  %1167 = vperm.xlu0 %1166, %v147
  %v1168 = vpop.permute.xlu0 %1167
  %1169 = vset.pattern.permute.xlu0 1
  %1170 = vperm.xlu0 %1169, %v148
  %v1171 = vpop.permute.xlu0 %1170
  %1172 = vset.pattern.permute.xlu0 1
  %1173 = vperm.xlu0 %1172, %v149
  %v1174 = vpop.permute.xlu0 %1173
  %1175 = vset.pattern.permute.xlu0 1
  %1176 = vperm.xlu0 %1175, %v150
  %v1177 = vpop.permute.xlu0 %1176
  %1178 = vset.pattern.permute.xlu0 1
  %1179 = vperm.xlu0 %1178, %v151
  %v1180 = vpop.permute.xlu0 %1179
  %vm1181 = vcmp.eq.s32.totalorder %v1131, %v1135
  %vm1182 = vcmp.eq.s32.totalorder %v1132, %v1135
  %vm1183 = vcmp.eq.s32.totalorder %v1131, %v1138
  %vm1184 = vcmp.eq.s32.totalorder %v1132, %v1138
  %vm1185 = vcmp.eq.s32.totalorder %v1131, %v1141
  %vm1186 = vcmp.eq.s32.totalorder %v1132, %v1141
  %vm1187 = vcmp.eq.s32.totalorder %v1131, %v1144
  %vm1188 = vcmp.eq.s32.totalorder %v1132, %v1144
  %vm1189 = vcmp.eq.s32.totalorder %v1131, %v1147
  %vm1190 = vcmp.eq.s32.totalorder %v1132, %v1147
  %vm1191 = vcmp.eq.s32.totalorder %v1131, %v1150
  %vm1192 = vcmp.eq.s32.totalorder %v1132, %v1150
  %vm1193 = vcmp.eq.s32.totalorder %v1131, %v1153
  %vm1194 = vcmp.eq.s32.totalorder %v1132, %v1153
  %vm1195 = vcmp.eq.s32.totalorder %v1131, %v1156
  %vm1196 = vcmp.eq.s32.totalorder %v1132, %v1156
  %vm1197 = vcmp.eq.s32.totalorder %v1131, %v1159
  %vm1198 = vcmp.eq.s32.totalorder %v1132, %v1159
  %vm1199 = vcmp.eq.s32.totalorder %v1131, %v1162
  %vm1200 = vcmp.eq.s32.totalorder %v1132, %v1162
  %vm1201 = vcmp.eq.s32.totalorder %v1131, %v1165
  %vm1202 = vcmp.eq.s32.totalorder %v1132, %v1165
  %vm1203 = vcmp.eq.s32.totalorder %v1131, %v1168
  %vm1204 = vcmp.eq.s32.totalorder %v1132, %v1168
  %vm1205 = vcmp.eq.s32.totalorder %v1131, %v1171
  %vm1206 = vcmp.eq.s32.totalorder %v1132, %v1171
  %vm1207 = vcmp.eq.s32.totalorder %v1131, %v1174
  %vm1208 = vcmp.eq.s32.totalorder %v1132, %v1174
  %vm1209 = vcmp.eq.s32.totalorder %v1131, %v1177
  %vm1210 = vcmp.eq.s32.totalorder %v1132, %v1177
  %vm1211 = vcmp.eq.s32.totalorder %v1131, %v1180
  %vm1212 = vcmp.eq.s32.totalorder %v1132, %v1180
  %1213 = vset.pattern.permute.xlu0 1
  %1214 = vperm.xlu0 %1213, %v745
  %v1215 = vpop.permute.xlu0 %1214
  %1217 = vset.pattern.permute.xlu0 1
  %1218 = vperm.xlu0 %1217, %v746
  %v1219 = vpop.permute.xlu0 %1218
  %1221 = vset.pattern.permute.xlu0 1
  %1222 = vperm.xlu0 %1221, %v747
  %v1223 = vpop.permute.xlu0 %1222
  %1225 = vset.pattern.permute.xlu0 1
  %1226 = vperm.xlu0 %1225, %v748
  %v1227 = vpop.permute.xlu0 %1226
  %1229 = vset.pattern.permute.xlu0 1
  %1230 = vperm.xlu0 %1229, %v749
  %v1231 = vpop.permute.xlu0 %1230
  %1233 = vset.pattern.permute.xlu0 1
  %1234 = vperm.xlu0 %1233, %v750
  %v1235 = vpop.permute.xlu0 %1234
  %1237 = vset.pattern.permute.xlu0 1
  %1238 = vperm.xlu0 %1237, %v751
  %v1239 = vpop.permute.xlu0 %1238
  %1241 = vset.pattern.permute.xlu0 1
  %1242 = vperm.xlu0 %1241, %v752
  %v1243 = vpop.permute.xlu0 %1242
  %1245 = vset.pattern.permute.xlu0 1
  %1246 = vperm.xlu0 %1245, %v753
  %v1247 = vpop.permute.xlu0 %1246
  %1249 = vset.pattern.permute.xlu0 1
  %1250 = vperm.xlu0 %1249, %v754
  %v1251 = vpop.permute.xlu0 %1250
  %1253 = vset.pattern.permute.xlu0 1
  %1254 = vperm.xlu0 %1253, %v755
  %v1255 = vpop.permute.xlu0 %1254
  %1257 = vset.pattern.permute.xlu0 1
  %1258 = vperm.xlu0 %1257, %v756
  %v1259 = vpop.permute.xlu0 %1258
  %1261 = vset.pattern.permute.xlu0 1
  %1262 = vperm.xlu0 %1261, %v757
  %v1263 = vpop.permute.xlu0 %1262
  %1265 = vset.pattern.permute.xlu0 1
  %1266 = vperm.xlu0 %1265, %v758
  %v1267 = vpop.permute.xlu0 %1266
  %1269 = vset.pattern.permute.xlu0 1
  %1270 = vperm.xlu0 %1269, %v759
  %v1271 = vpop.permute.xlu0 %1270
  %1273 = vset.pattern.permute.xlu0 1
  %1274 = vperm.xlu0 %1273, %v760
  %v1275 = vpop.permute.xlu0 %1274
  %v1277 = vsel %vm1181, %v1215, 0.0
  %v1278 = vsel %vm1182, %v1215, 0.0
  %v1279 = vsel %vm1183, %v1219, 0.0
  %v1280 = vsel %vm1184, %v1219, 0.0
  %v1281 = vsel %vm1185, %v1223, 0.0
  %v1282 = vsel %vm1186, %v1223, 0.0
  %v1283 = vsel %vm1187, %v1227, 0.0
  %v1284 = vsel %vm1188, %v1227, 0.0
  %v1285 = vsel %vm1189, %v1231, 0.0
  %v1286 = vsel %vm1190, %v1231, 0.0
  %v1287 = vsel %vm1191, %v1235, 0.0
  %v1288 = vsel %vm1192, %v1235, 0.0
  %v1289 = vsel %vm1193, %v1239, 0.0
  %v1290 = vsel %vm1194, %v1239, 0.0
  %v1291 = vsel %vm1195, %v1243, 0.0
  %v1292 = vsel %vm1196, %v1243, 0.0
  %v1293 = vsel %vm1197, %v1247, 0.0
  %v1294 = vsel %vm1198, %v1247, 0.0
  %v1295 = vsel %vm1199, %v1251, 0.0
  %v1296 = vsel %vm1200, %v1251, 0.0
  %v1297 = vsel %vm1201, %v1255, 0.0
  %v1298 = vsel %vm1202, %v1255, 0.0
  %v1299 = vsel %vm1203, %v1259, 0.0
  %v1300 = vsel %vm1204, %v1259, 0.0
  %v1301 = vsel %vm1205, %v1263, 0.0
  %v1302 = vsel %vm1206, %v1263, 0.0
  %v1303 = vsel %vm1207, %v1267, 0.0
  %v1304 = vsel %vm1208, %v1267, 0.0
  %v1305 = vsel %vm1209, %v1271, 0.0
  %v1306 = vsel %vm1210, %v1271, 0.0
  %v1307 = vsel %vm1211, %v1275, 0.0
  %v1308 = vsel %vm1212, %v1275, 0.0
  %1309 = vset.pattern.permute.xlu0 1
  %1310 = vperm.xlu0 %1309, %v649
  %v1311 = vpop.permute.xlu0 %1310
  %1312 = vset.pattern.permute.xlu0 1
  %1313 = vperm.xlu0 %1312, %v650
  %v1314 = vpop.permute.xlu0 %1313
  %1315 = vset.pattern.permute.xlu0 1
  %1316 = vperm.xlu0 %1315, %v651
  %v1317 = vpop.permute.xlu0 %1316
  %1318 = vset.pattern.permute.xlu0 1
  %1319 = vperm.xlu0 %1318, %v652
  %v1320 = vpop.permute.xlu0 %1319
  %1321 = vset.pattern.permute.xlu0 1
  %1322 = vperm.xlu0 %1321, %v653
  %v1323 = vpop.permute.xlu0 %1322
  %1324 = vset.pattern.permute.xlu0 1
  %1325 = vperm.xlu0 %1324, %v654
  %v1326 = vpop.permute.xlu0 %1325
  %1327 = vset.pattern.permute.xlu0 1
  %1328 = vperm.xlu0 %1327, %v655
  %v1329 = vpop.permute.xlu0 %1328
  %1330 = vset.pattern.permute.xlu0 1
  %1331 = vperm.xlu0 %1330, %v656
  %v1332 = vpop.permute.xlu0 %1331
  %1333 = vset.pattern.permute.xlu0 1
  %1334 = vperm.xlu0 %1333, %v657
  %v1335 = vpop.permute.xlu0 %1334
  %1336 = vset.pattern.permute.xlu0 1
  %1337 = vperm.xlu0 %1336, %v658
  %v1338 = vpop.permute.xlu0 %1337
  %1339 = vset.pattern.permute.xlu0 1
  %1340 = vperm.xlu0 %1339, %v659
  %v1341 = vpop.permute.xlu0 %1340
  %1342 = vset.pattern.permute.xlu0 1
  %1343 = vperm.xlu0 %1342, %v660
  %v1344 = vpop.permute.xlu0 %1343
  %1345 = vset.pattern.permute.xlu0 1
  %1346 = vperm.xlu0 %1345, %v661
  %v1347 = vpop.permute.xlu0 %1346
  %1348 = vset.pattern.permute.xlu0 1
  %1349 = vperm.xlu0 %1348, %v662
  %v1350 = vpop.permute.xlu0 %1349
  %1351 = vset.pattern.permute.xlu0 1
  %1352 = vperm.xlu0 %1351, %v663
  %v1353 = vpop.permute.xlu0 %1352
  %1354 = vset.pattern.permute.xlu0 1
  %1355 = vperm.xlu0 %1354, %v664
  %v1356 = vpop.permute.xlu0 %1355
  %vm1357 = vcmp.eq.s32.totalorder %v1131, %v1311
  %vm1358 = vcmp.eq.s32.totalorder %v1132, %v1311
  %vm1359 = vcmp.eq.s32.totalorder %v1131, %v1314
  %vm1360 = vcmp.eq.s32.totalorder %v1132, %v1314
  %vm1361 = vcmp.eq.s32.totalorder %v1131, %v1317
  %vm1362 = vcmp.eq.s32.totalorder %v1132, %v1317
  %vm1363 = vcmp.eq.s32.totalorder %v1131, %v1320
  %vm1364 = vcmp.eq.s32.totalorder %v1132, %v1320
  %vm1365 = vcmp.eq.s32.totalorder %v1131, %v1323
  %vm1366 = vcmp.eq.s32.totalorder %v1132, %v1323
  %vm1367 = vcmp.eq.s32.totalorder %v1131, %v1326
  %vm1368 = vcmp.eq.s32.totalorder %v1132, %v1326
  %vm1369 = vcmp.eq.s32.totalorder %v1131, %v1329
  %vm1370 = vcmp.eq.s32.totalorder %v1132, %v1329
  %vm1371 = vcmp.eq.s32.totalorder %v1131, %v1332
  %vm1372 = vcmp.eq.s32.totalorder %v1132, %v1332
  %vm1373 = vcmp.eq.s32.totalorder %v1131, %v1335
  %vm1374 = vcmp.eq.s32.totalorder %v1132, %v1335
  %vm1375 = vcmp.eq.s32.totalorder %v1131, %v1338
  %vm1376 = vcmp.eq.s32.totalorder %v1132, %v1338
  %vm1377 = vcmp.eq.s32.totalorder %v1131, %v1341
  %vm1378 = vcmp.eq.s32.totalorder %v1132, %v1341
  %vm1379 = vcmp.eq.s32.totalorder %v1131, %v1344
  %vm1380 = vcmp.eq.s32.totalorder %v1132, %v1344
  %vm1381 = vcmp.eq.s32.totalorder %v1131, %v1347
  %vm1382 = vcmp.eq.s32.totalorder %v1132, %v1347
  %vm1383 = vcmp.eq.s32.totalorder %v1131, %v1350
  %vm1384 = vcmp.eq.s32.totalorder %v1132, %v1350
  %vm1385 = vcmp.eq.s32.totalorder %v1131, %v1353
  %vm1386 = vcmp.eq.s32.totalorder %v1132, %v1353
  %vm1387 = vcmp.eq.s32.totalorder %v1131, %v1356
  %vm1388 = vcmp.eq.s32.totalorder %v1132, %v1356
  %1389 = vset.pattern.permute.xlu0 1
  %1390 = vperm.xlu0 %1389, %v120
  %v1391 = vpop.permute.xlu0 %1390
  %1393 = vset.pattern.permute.xlu0 1
  %1394 = vperm.xlu0 %1393, %v121
  %v1395 = vpop.permute.xlu0 %1394
  %1397 = vset.pattern.permute.xlu0 1
  %1398 = vperm.xlu0 %1397, %v122
  %v1399 = vpop.permute.xlu0 %1398
  %1401 = vset.pattern.permute.xlu0 1
  %1402 = vperm.xlu0 %1401, %v123
  %v1403 = vpop.permute.xlu0 %1402
  %1405 = vset.pattern.permute.xlu0 1
  %1406 = vperm.xlu0 %1405, %v124
  %v1407 = vpop.permute.xlu0 %1406
  %1409 = vset.pattern.permute.xlu0 1
  %1410 = vperm.xlu0 %1409, %v125
  %v1411 = vpop.permute.xlu0 %1410
  %1413 = vset.pattern.permute.xlu0 1
  %1414 = vperm.xlu0 %1413, %v126
  %v1415 = vpop.permute.xlu0 %1414
  %1417 = vset.pattern.permute.xlu0 1
  %1418 = vperm.xlu0 %1417, %v127
  %v1419 = vpop.permute.xlu0 %1418
  %1421 = vset.pattern.permute.xlu0 1
  %1422 = vperm.xlu0 %1421, %v128
  %v1423 = vpop.permute.xlu0 %1422
  %1425 = vset.pattern.permute.xlu0 1
  %1426 = vperm.xlu0 %1425, %v129
  %v1427 = vpop.permute.xlu0 %1426
  %1429 = vset.pattern.permute.xlu0 1
  %1430 = vperm.xlu0 %1429, %v130
  %v1431 = vpop.permute.xlu0 %1430
  %1433 = vset.pattern.permute.xlu0 1
  %1434 = vperm.xlu0 %1433, %v131
  %v1435 = vpop.permute.xlu0 %1434
  %1437 = vset.pattern.permute.xlu0 1
  %1438 = vperm.xlu0 %1437, %v132
  %v1439 = vpop.permute.xlu0 %1438
  %1441 = vset.pattern.permute.xlu0 1
  %1442 = vperm.xlu0 %1441, %v133
  %v1443 = vpop.permute.xlu0 %1442
  %1445 = vset.pattern.permute.xlu0 1
  %1446 = vperm.xlu0 %1445, %v134
  %v1447 = vpop.permute.xlu0 %1446
  %1449 = vset.pattern.permute.xlu0 1
  %1450 = vperm.xlu0 %1449, %v135
  %v1451 = vpop.permute.xlu0 %1450
  %v1453 = vsel %vm1357, %v1391, 0.0
  %v1454 = vsel %vm1358, %v1391, 0.0
  %v1455 = vsel %vm1359, %v1395, 0.0
  %v1456 = vsel %vm1360, %v1395, 0.0
  %v1457 = vsel %vm1361, %v1399, 0.0
  %v1458 = vsel %vm1362, %v1399, 0.0
  %v1459 = vsel %vm1363, %v1403, 0.0
  %v1460 = vsel %vm1364, %v1403, 0.0
  %v1461 = vsel %vm1365, %v1407, 0.0
  %v1462 = vsel %vm1366, %v1407, 0.0
  %v1463 = vsel %vm1367, %v1411, 0.0
  %v1464 = vsel %vm1368, %v1411, 0.0
  %v1465 = vsel %vm1369, %v1415, 0.0
  %v1466 = vsel %vm1370, %v1415, 0.0
  %v1467 = vsel %vm1371, %v1419, 0.0
  %v1468 = vsel %vm1372, %v1419, 0.0
  %v1469 = vsel %vm1373, %v1423, 0.0
  %v1470 = vsel %vm1374, %v1423, 0.0
  %v1471 = vsel %vm1375, %v1427, 0.0
  %v1472 = vsel %vm1376, %v1427, 0.0
  %v1473 = vsel %vm1377, %v1431, 0.0
  %v1474 = vsel %vm1378, %v1431, 0.0
  %v1475 = vsel %vm1379, %v1435, 0.0
  %v1476 = vsel %vm1380, %v1435, 0.0
  %v1477 = vsel %vm1381, %v1439, 0.0
  %v1478 = vsel %vm1382, %v1439, 0.0
  %v1479 = vsel %vm1383, %v1443, 0.0
  %v1480 = vsel %vm1384, %v1443, 0.0
  %v1481 = vsel %vm1385, %v1447, 0.0
  %v1482 = vsel %vm1386, %v1447, 0.0
  %v1483 = vsel %vm1387, %v1451, 0.0
  %v1484 = vsel %vm1388, %v1451, 0.0
  %v1485 = vadd.f32 %v1277, %v1453
  %v1486 = vadd.f32 %v1278, %v1454
  %v1487 = vadd.f32 %v1279, %v1455
  %v1488 = vadd.f32 %v1280, %v1456
  %v1489 = vadd.f32 %v1281, %v1457
  %v1490 = vadd.f32 %v1282, %v1458
  %v1491 = vadd.f32 %v1283, %v1459
  %v1492 = vadd.f32 %v1284, %v1460
  %v1493 = vadd.f32 %v1285, %v1461
  %v1494 = vadd.f32 %v1286, %v1462
  %v1495 = vadd.f32 %v1287, %v1463
  %v1496 = vadd.f32 %v1288, %v1464
  %v1497 = vadd.f32 %v1289, %v1465
  %v1498 = vadd.f32 %v1290, %v1466
  %v1499 = vadd.f32 %v1291, %v1467
  %v1500 = vadd.f32 %v1292, %v1468
  %v1501 = vadd.f32 %v1293, %v1469
  %v1502 = vadd.f32 %v1294, %v1470
  %v1503 = vadd.f32 %v1295, %v1471
  %v1504 = vadd.f32 %v1296, %v1472
  %v1505 = vadd.f32 %v1297, %v1473
  %v1506 = vadd.f32 %v1298, %v1474
  %v1507 = vadd.f32 %v1299, %v1475
  %v1508 = vadd.f32 %v1300, %v1476
  %v1509 = vadd.f32 %v1301, %v1477
  %v1510 = vadd.f32 %v1302, %v1478
  %v1511 = vadd.f32 %v1303, %v1479
  %v1512 = vadd.f32 %v1304, %v1480
  %v1513 = vadd.f32 %v1305, %v1481
  %v1514 = vadd.f32 %v1306, %v1482
  %v1515 = vadd.f32 %v1307, %v1483
  %v1516 = vadd.f32 %v1308, %v1484
  %v1517 = vmul.f32 %v1097, %v1485
  %v1518 = vmul.f32 %v1098, %v1486
  %v1519 = vmul.f32 %v1099, %v1487
  %v1520 = vmul.f32 %v1100, %v1488
  %v1521 = vmul.f32 %v1101, %v1489
  %v1522 = vmul.f32 %v1102, %v1490
  %v1523 = vmul.f32 %v1103, %v1491
  %v1524 = vmul.f32 %v1104, %v1492
  %v1525 = vmul.f32 %v1105, %v1493
  %v1526 = vmul.f32 %v1106, %v1494
  %v1527 = vmul.f32 %v1107, %v1495
  %v1528 = vmul.f32 %v1108, %v1496
  %v1529 = vmul.f32 %v1109, %v1497
  %v1530 = vmul.f32 %v1110, %v1498
  %v1531 = vmul.f32 %v1111, %v1499
  %v1532 = vmul.f32 %v1112, %v1500
  %v1533 = vmul.f32 %v1113, %v1501
  %v1534 = vmul.f32 %v1114, %v1502
  %v1535 = vmul.f32 %v1115, %v1503
  %v1536 = vmul.f32 %v1116, %v1504
  %v1537 = vmul.f32 %v1117, %v1505
  %v1538 = vmul.f32 %v1118, %v1506
  %v1539 = vmul.f32 %v1119, %v1507
  %v1540 = vmul.f32 %v1120, %v1508
  %v1541 = vmul.f32 %v1121, %v1509
  %v1542 = vmul.f32 %v1122, %v1510
  %v1543 = vmul.f32 %v1123, %v1511
  %v1544 = vmul.f32 %v1124, %v1512
  %v1545 = vmul.f32 %v1125, %v1513
  %v1546 = vmul.f32 %v1126, %v1514
  %v1547 = vmul.f32 %v1127, %v1515
  %v1548 = vmul.f32 %v1128, %v1516
  %v1549 = vshra.s32 %v157, 4
  %v1550 = vshra.s32 %v158, 4
  %v1551 = vand.u32 %v1549, 3
  %v1552 = vand.u32 %v1550, 3
  %1553 = vset.pattern.permute.xlu0 2
  %1554 = vperm.xlu0 %1553, %v136
  %v1555 = vpop.permute.xlu0 %1554
  %1556 = vset.pattern.permute.xlu0 2
  %1557 = vperm.xlu0 %1556, %v137
  %v1558 = vpop.permute.xlu0 %1557
  %1559 = vset.pattern.permute.xlu0 2
  %1560 = vperm.xlu0 %1559, %v138
  %v1561 = vpop.permute.xlu0 %1560
  %1562 = vset.pattern.permute.xlu0 2
  %1563 = vperm.xlu0 %1562, %v139
  %v1564 = vpop.permute.xlu0 %1563
  %1565 = vset.pattern.permute.xlu0 2
  %1566 = vperm.xlu0 %1565, %v140
  %v1567 = vpop.permute.xlu0 %1566
  %1568 = vset.pattern.permute.xlu0 2
  %1569 = vperm.xlu0 %1568, %v141
  %v1570 = vpop.permute.xlu0 %1569
  %1571 = vset.pattern.permute.xlu0 2
  %1572 = vperm.xlu0 %1571, %v142
  %v1573 = vpop.permute.xlu0 %1572
  %1574 = vset.pattern.permute.xlu0 2
  %1575 = vperm.xlu0 %1574, %v143
  %v1576 = vpop.permute.xlu0 %1575
  %1577 = vset.pattern.permute.xlu0 2
  %1578 = vperm.xlu0 %1577, %v144
  %v1579 = vpop.permute.xlu0 %1578
  %1580 = vset.pattern.permute.xlu0 2
  %1581 = vperm.xlu0 %1580, %v145
  %v1582 = vpop.permute.xlu0 %1581
  %1583 = vset.pattern.permute.xlu0 2
  %1584 = vperm.xlu0 %1583, %v146
  %v1585 = vpop.permute.xlu0 %1584
  %1586 = vset.pattern.permute.xlu0 2
  %1587 = vperm.xlu0 %1586, %v147
  %v1588 = vpop.permute.xlu0 %1587
  %1589 = vset.pattern.permute.xlu0 2
  %1590 = vperm.xlu0 %1589, %v148
  %v1591 = vpop.permute.xlu0 %1590
  %1592 = vset.pattern.permute.xlu0 2
  %1593 = vperm.xlu0 %1592, %v149
  %v1594 = vpop.permute.xlu0 %1593
  %1595 = vset.pattern.permute.xlu0 2
  %1596 = vperm.xlu0 %1595, %v150
  %v1597 = vpop.permute.xlu0 %1596
  %1598 = vset.pattern.permute.xlu0 2
  %1599 = vperm.xlu0 %1598, %v151
  %v1600 = vpop.permute.xlu0 %1599
  %vm1601 = vcmp.eq.s32.totalorder %v1551, %v1555
  %vm1602 = vcmp.eq.s32.totalorder %v1552, %v1555
  %vm1603 = vcmp.eq.s32.totalorder %v1551, %v1558
  %vm1604 = vcmp.eq.s32.totalorder %v1552, %v1558
  %vm1605 = vcmp.eq.s32.totalorder %v1551, %v1561
  %vm1606 = vcmp.eq.s32.totalorder %v1552, %v1561
  %vm1607 = vcmp.eq.s32.totalorder %v1551, %v1564
  %vm1608 = vcmp.eq.s32.totalorder %v1552, %v1564
  %vm1609 = vcmp.eq.s32.totalorder %v1551, %v1567
  %vm1610 = vcmp.eq.s32.totalorder %v1552, %v1567
  %vm1611 = vcmp.eq.s32.totalorder %v1551, %v1570
  %vm1612 = vcmp.eq.s32.totalorder %v1552, %v1570
  %vm1613 = vcmp.eq.s32.totalorder %v1551, %v1573
  %vm1614 = vcmp.eq.s32.totalorder %v1552, %v1573
  %vm1615 = vcmp.eq.s32.totalorder %v1551, %v1576
  %vm1616 = vcmp.eq.s32.totalorder %v1552, %v1576
  %vm1617 = vcmp.eq.s32.totalorder %v1551, %v1579
  %vm1618 = vcmp.eq.s32.totalorder %v1552, %v1579
  %vm1619 = vcmp.eq.s32.totalorder %v1551, %v1582
  %vm1620 = vcmp.eq.s32.totalorder %v1552, %v1582
  %vm1621 = vcmp.eq.s32.totalorder %v1551, %v1585
  %vm1622 = vcmp.eq.s32.totalorder %v1552, %v1585
  %vm1623 = vcmp.eq.s32.totalorder %v1551, %v1588
  %vm1624 = vcmp.eq.s32.totalorder %v1552, %v1588
  %vm1625 = vcmp.eq.s32.totalorder %v1551, %v1591
  %vm1626 = vcmp.eq.s32.totalorder %v1552, %v1591
  %vm1627 = vcmp.eq.s32.totalorder %v1551, %v1594
  %vm1628 = vcmp.eq.s32.totalorder %v1552, %v1594
  %vm1629 = vcmp.eq.s32.totalorder %v1551, %v1597
  %vm1630 = vcmp.eq.s32.totalorder %v1552, %v1597
  %vm1631 = vcmp.eq.s32.totalorder %v1551, %v1600
  %vm1632 = vcmp.eq.s32.totalorder %v1552, %v1600
  %1633 = vset.pattern.permute.xlu0 2
  %1634 = vperm.xlu0 %1633, %v745
  %v1635 = vpop.permute.xlu0 %1634
  %1637 = vset.pattern.permute.xlu0 2
  %1638 = vperm.xlu0 %1637, %v746
  %v1639 = vpop.permute.xlu0 %1638
  %1641 = vset.pattern.permute.xlu0 2
  %1642 = vperm.xlu0 %1641, %v747
  %v1643 = vpop.permute.xlu0 %1642
  %1645 = vset.pattern.permute.xlu0 2
  %1646 = vperm.xlu0 %1645, %v748
  %v1647 = vpop.permute.xlu0 %1646
  %1649 = vset.pattern.permute.xlu0 2
  %1650 = vperm.xlu0 %1649, %v749
  %v1651 = vpop.permute.xlu0 %1650
  %1653 = vset.pattern.permute.xlu0 2
  %1654 = vperm.xlu0 %1653, %v750
  %v1655 = vpop.permute.xlu0 %1654
  %1657 = vset.pattern.permute.xlu0 2
  %1658 = vperm.xlu0 %1657, %v751
  %v1659 = vpop.permute.xlu0 %1658
  %1661 = vset.pattern.permute.xlu0 2
  %1662 = vperm.xlu0 %1661, %v752
  %v1663 = vpop.permute.xlu0 %1662
  %1665 = vset.pattern.permute.xlu0 2
  %1666 = vperm.xlu0 %1665, %v753
  %v1667 = vpop.permute.xlu0 %1666
  %1669 = vset.pattern.permute.xlu0 2
  %1670 = vperm.xlu0 %1669, %v754
  %v1671 = vpop.permute.xlu0 %1670
  %1673 = vset.pattern.permute.xlu0 2
  %1674 = vperm.xlu0 %1673, %v755
  %v1675 = vpop.permute.xlu0 %1674
  %1677 = vset.pattern.permute.xlu0 2
  %1678 = vperm.xlu0 %1677, %v756
  %v1679 = vpop.permute.xlu0 %1678
  %1681 = vset.pattern.permute.xlu0 2
  %1682 = vperm.xlu0 %1681, %v757
  %v1683 = vpop.permute.xlu0 %1682
  %1685 = vset.pattern.permute.xlu0 2
  %1686 = vperm.xlu0 %1685, %v758
  %v1687 = vpop.permute.xlu0 %1686
  %1689 = vset.pattern.permute.xlu0 2
  %1690 = vperm.xlu0 %1689, %v759
  %v1691 = vpop.permute.xlu0 %1690
  %1693 = vset.pattern.permute.xlu0 2
  %1694 = vperm.xlu0 %1693, %v760
  %v1695 = vpop.permute.xlu0 %1694
  %v1697 = vsel %vm1601, %v1635, 0.0
  %v1698 = vsel %vm1602, %v1635, 0.0
  %v1699 = vsel %vm1603, %v1639, 0.0
  %v1700 = vsel %vm1604, %v1639, 0.0
  %v1701 = vsel %vm1605, %v1643, 0.0
  %v1702 = vsel %vm1606, %v1643, 0.0
  %v1703 = vsel %vm1607, %v1647, 0.0
  %v1704 = vsel %vm1608, %v1647, 0.0
  %v1705 = vsel %vm1609, %v1651, 0.0
  %v1706 = vsel %vm1610, %v1651, 0.0
  %v1707 = vsel %vm1611, %v1655, 0.0
  %v1708 = vsel %vm1612, %v1655, 0.0
  %v1709 = vsel %vm1613, %v1659, 0.0
  %v1710 = vsel %vm1614, %v1659, 0.0
  %v1711 = vsel %vm1615, %v1663, 0.0
  %v1712 = vsel %vm1616, %v1663, 0.0
  %v1713 = vsel %vm1617, %v1667, 0.0
  %v1714 = vsel %vm1618, %v1667, 0.0
  %v1715 = vsel %vm1619, %v1671, 0.0
  %v1716 = vsel %vm1620, %v1671, 0.0
  %v1717 = vsel %vm1621, %v1675, 0.0
  %v1718 = vsel %vm1622, %v1675, 0.0
  %v1719 = vsel %vm1623, %v1679, 0.0
  %v1720 = vsel %vm1624, %v1679, 0.0
  %v1721 = vsel %vm1625, %v1683, 0.0
  %v1722 = vsel %vm1626, %v1683, 0.0
  %v1723 = vsel %vm1627, %v1687, 0.0
  %v1724 = vsel %vm1628, %v1687, 0.0
  %v1725 = vsel %vm1629, %v1691, 0.0
  %v1726 = vsel %vm1630, %v1691, 0.0
  %v1727 = vsel %vm1631, %v1695, 0.0
  %v1728 = vsel %vm1632, %v1695, 0.0
  %1729 = vset.pattern.permute.xlu0 2
  %1730 = vperm.xlu0 %1729, %v649
  %v1731 = vpop.permute.xlu0 %1730
  %1732 = vset.pattern.permute.xlu0 2
  %1733 = vperm.xlu0 %1732, %v650
  %v1734 = vpop.permute.xlu0 %1733
  %1735 = vset.pattern.permute.xlu0 2
  %1736 = vperm.xlu0 %1735, %v651
  %v1737 = vpop.permute.xlu0 %1736
  %1738 = vset.pattern.permute.xlu0 2
  %1739 = vperm.xlu0 %1738, %v652
  %v1740 = vpop.permute.xlu0 %1739
  %1741 = vset.pattern.permute.xlu0 2
  %1742 = vperm.xlu0 %1741, %v653
  %v1743 = vpop.permute.xlu0 %1742
  %1744 = vset.pattern.permute.xlu0 2
  %1745 = vperm.xlu0 %1744, %v654
  %v1746 = vpop.permute.xlu0 %1745
  %1747 = vset.pattern.permute.xlu0 2
  %1748 = vperm.xlu0 %1747, %v655
  %v1749 = vpop.permute.xlu0 %1748
  %1750 = vset.pattern.permute.xlu0 2
  %1751 = vperm.xlu0 %1750, %v656
  %v1752 = vpop.permute.xlu0 %1751
  %1753 = vset.pattern.permute.xlu0 2
  %1754 = vperm.xlu0 %1753, %v657
  %v1755 = vpop.permute.xlu0 %1754
  %1756 = vset.pattern.permute.xlu0 2
  %1757 = vperm.xlu0 %1756, %v658
  %v1758 = vpop.permute.xlu0 %1757
  %1759 = vset.pattern.permute.xlu0 2
  %1760 = vperm.xlu0 %1759, %v659
  %v1761 = vpop.permute.xlu0 %1760
  %1762 = vset.pattern.permute.xlu0 2
  %1763 = vperm.xlu0 %1762, %v660
  %v1764 = vpop.permute.xlu0 %1763
  %1765 = vset.pattern.permute.xlu0 2
  %1766 = vperm.xlu0 %1765, %v661
  %v1767 = vpop.permute.xlu0 %1766
  %1768 = vset.pattern.permute.xlu0 2
  %1769 = vperm.xlu0 %1768, %v662
  %v1770 = vpop.permute.xlu0 %1769
  %1771 = vset.pattern.permute.xlu0 2
  %1772 = vperm.xlu0 %1771, %v663
  %v1773 = vpop.permute.xlu0 %1772
  %1774 = vset.pattern.permute.xlu0 2
  %1775 = vperm.xlu0 %1774, %v664
  %v1776 = vpop.permute.xlu0 %1775
  %vm1777 = vcmp.eq.s32.totalorder %v1551, %v1731
  %vm1778 = vcmp.eq.s32.totalorder %v1552, %v1731
  %vm1779 = vcmp.eq.s32.totalorder %v1551, %v1734
  %vm1780 = vcmp.eq.s32.totalorder %v1552, %v1734
  %vm1781 = vcmp.eq.s32.totalorder %v1551, %v1737
  %vm1782 = vcmp.eq.s32.totalorder %v1552, %v1737
  %vm1783 = vcmp.eq.s32.totalorder %v1551, %v1740
  %vm1784 = vcmp.eq.s32.totalorder %v1552, %v1740
  %vm1785 = vcmp.eq.s32.totalorder %v1551, %v1743
  %vm1786 = vcmp.eq.s32.totalorder %v1552, %v1743
  %vm1787 = vcmp.eq.s32.totalorder %v1551, %v1746
  %vm1788 = vcmp.eq.s32.totalorder %v1552, %v1746
  %vm1789 = vcmp.eq.s32.totalorder %v1551, %v1749
  %vm1790 = vcmp.eq.s32.totalorder %v1552, %v1749
  %vm1791 = vcmp.eq.s32.totalorder %v1551, %v1752
  %vm1792 = vcmp.eq.s32.totalorder %v1552, %v1752
  %vm1793 = vcmp.eq.s32.totalorder %v1551, %v1755
  %vm1794 = vcmp.eq.s32.totalorder %v1552, %v1755
  %vm1795 = vcmp.eq.s32.totalorder %v1551, %v1758
  %vm1796 = vcmp.eq.s32.totalorder %v1552, %v1758
  %vm1797 = vcmp.eq.s32.totalorder %v1551, %v1761
  %vm1798 = vcmp.eq.s32.totalorder %v1552, %v1761
  %vm1799 = vcmp.eq.s32.totalorder %v1551, %v1764
  %vm1800 = vcmp.eq.s32.totalorder %v1552, %v1764
  %vm1801 = vcmp.eq.s32.totalorder %v1551, %v1767
  %vm1802 = vcmp.eq.s32.totalorder %v1552, %v1767
  %vm1803 = vcmp.eq.s32.totalorder %v1551, %v1770
  %vm1804 = vcmp.eq.s32.totalorder %v1552, %v1770
  %vm1805 = vcmp.eq.s32.totalorder %v1551, %v1773
  %vm1806 = vcmp.eq.s32.totalorder %v1552, %v1773
  %vm1807 = vcmp.eq.s32.totalorder %v1551, %v1776
  %vm1808 = vcmp.eq.s32.totalorder %v1552, %v1776
  %1809 = vset.pattern.permute.xlu0 2
  %1810 = vperm.xlu0 %1809, %v120
  %v1811 = vpop.permute.xlu0 %1810
  %1813 = vset.pattern.permute.xlu0 2
  %1814 = vperm.xlu0 %1813, %v121
  %v1815 = vpop.permute.xlu0 %1814
  %1817 = vset.pattern.permute.xlu0 2
  %1818 = vperm.xlu0 %1817, %v122
  %v1819 = vpop.permute.xlu0 %1818
  %1821 = vset.pattern.permute.xlu0 2
  %1822 = vperm.xlu0 %1821, %v123
  %v1823 = vpop.permute.xlu0 %1822
  %1825 = vset.pattern.permute.xlu0 2
  %1826 = vperm.xlu0 %1825, %v124
  %v1827 = vpop.permute.xlu0 %1826
  %1829 = vset.pattern.permute.xlu0 2
  %1830 = vperm.xlu0 %1829, %v125
  %v1831 = vpop.permute.xlu0 %1830
  %1833 = vset.pattern.permute.xlu0 2
  %1834 = vperm.xlu0 %1833, %v126
  %v1835 = vpop.permute.xlu0 %1834
  %1837 = vset.pattern.permute.xlu0 2
  %1838 = vperm.xlu0 %1837, %v127
  %v1839 = vpop.permute.xlu0 %1838
  %1841 = vset.pattern.permute.xlu0 2
  %1842 = vperm.xlu0 %1841, %v128
  %v1843 = vpop.permute.xlu0 %1842
  %1845 = vset.pattern.permute.xlu0 2
  %1846 = vperm.xlu0 %1845, %v129
  %v1847 = vpop.permute.xlu0 %1846
  %1849 = vset.pattern.permute.xlu0 2
  %1850 = vperm.xlu0 %1849, %v130
  %v1851 = vpop.permute.xlu0 %1850
  %1853 = vset.pattern.permute.xlu0 2
  %1854 = vperm.xlu0 %1853, %v131
  %v1855 = vpop.permute.xlu0 %1854
  %1857 = vset.pattern.permute.xlu0 2
  %1858 = vperm.xlu0 %1857, %v132
  %v1859 = vpop.permute.xlu0 %1858
  %1861 = vset.pattern.permute.xlu0 2
  %1862 = vperm.xlu0 %1861, %v133
  %v1863 = vpop.permute.xlu0 %1862
  %1865 = vset.pattern.permute.xlu0 2
  %1866 = vperm.xlu0 %1865, %v134
  %v1867 = vpop.permute.xlu0 %1866
  %1869 = vset.pattern.permute.xlu0 2
  %1870 = vperm.xlu0 %1869, %v135
  %v1871 = vpop.permute.xlu0 %1870
  %v1873 = vsel %vm1777, %v1811, 0.0
  %v1874 = vsel %vm1778, %v1811, 0.0
  %v1875 = vsel %vm1779, %v1815, 0.0
  %v1876 = vsel %vm1780, %v1815, 0.0
  %v1877 = vsel %vm1781, %v1819, 0.0
  %v1878 = vsel %vm1782, %v1819, 0.0
  %v1879 = vsel %vm1783, %v1823, 0.0
  %v1880 = vsel %vm1784, %v1823, 0.0
  %v1881 = vsel %vm1785, %v1827, 0.0
  %v1882 = vsel %vm1786, %v1827, 0.0
  %v1883 = vsel %vm1787, %v1831, 0.0
  %v1884 = vsel %vm1788, %v1831, 0.0
  %v1885 = vsel %vm1789, %v1835, 0.0
  %v1886 = vsel %vm1790, %v1835, 0.0
  %v1887 = vsel %vm1791, %v1839, 0.0
  %v1888 = vsel %vm1792, %v1839, 0.0
  %v1889 = vsel %vm1793, %v1843, 0.0
  %v1890 = vsel %vm1794, %v1843, 0.0
  %v1891 = vsel %vm1795, %v1847, 0.0
  %v1892 = vsel %vm1796, %v1847, 0.0
  %v1893 = vsel %vm1797, %v1851, 0.0
  %v1894 = vsel %vm1798, %v1851, 0.0
  %v1895 = vsel %vm1799, %v1855, 0.0
  %v1896 = vsel %vm1800, %v1855, 0.0
  %v1897 = vsel %vm1801, %v1859, 0.0
  %v1898 = vsel %vm1802, %v1859, 0.0
  %v1899 = vsel %vm1803, %v1863, 0.0
  %v1900 = vsel %vm1804, %v1863, 0.0
  %v1901 = vsel %vm1805, %v1867, 0.0
  %v1902 = vsel %vm1806, %v1867, 0.0
  %v1903 = vsel %vm1807, %v1871, 0.0
  %v1904 = vsel %vm1808, %v1871, 0.0
  %v1905 = vadd.f32 %v1697, %v1873
  %v1906 = vadd.f32 %v1698, %v1874
  %v1907 = vadd.f32 %v1699, %v1875
  %v1908 = vadd.f32 %v1700, %v1876
  %v1909 = vadd.f32 %v1701, %v1877
  %v1910 = vadd.f32 %v1702, %v1878
  %v1911 = vadd.f32 %v1703, %v1879
  %v1912 = vadd.f32 %v1704, %v1880
  %v1913 = vadd.f32 %v1705, %v1881
  %v1914 = vadd.f32 %v1706, %v1882
  %v1915 = vadd.f32 %v1707, %v1883
  %v1916 = vadd.f32 %v1708, %v1884
  %v1917 = vadd.f32 %v1709, %v1885
  %v1918 = vadd.f32 %v1710, %v1886
  %v1919 = vadd.f32 %v1711, %v1887
  %v1920 = vadd.f32 %v1712, %v1888
  %v1921 = vadd.f32 %v1713, %v1889
  %v1922 = vadd.f32 %v1714, %v1890
  %v1923 = vadd.f32 %v1715, %v1891
  %v1924 = vadd.f32 %v1716, %v1892
  %v1925 = vadd.f32 %v1717, %v1893
  %v1926 = vadd.f32 %v1718, %v1894
  %v1927 = vadd.f32 %v1719, %v1895
  %v1928 = vadd.f32 %v1720, %v1896
  %v1929 = vadd.f32 %v1721, %v1897
  %v1930 = vadd.f32 %v1722, %v1898
  %v1931 = vadd.f32 %v1723, %v1899
  %v1932 = vadd.f32 %v1724, %v1900
  %v1933 = vadd.f32 %v1725, %v1901
  %v1934 = vadd.f32 %v1726, %v1902
  %v1935 = vadd.f32 %v1727, %v1903
  %v1936 = vadd.f32 %v1728, %v1904
  %v1937 = vmul.f32 %v1517, %v1905
  %v1938 = vmul.f32 %v1518, %v1906
  %v1939 = vmul.f32 %v1519, %v1907
  %v1940 = vmul.f32 %v1520, %v1908
  %v1941 = vmul.f32 %v1521, %v1909
  %v1942 = vmul.f32 %v1522, %v1910
  %v1943 = vmul.f32 %v1523, %v1911
  %v1944 = vmul.f32 %v1524, %v1912
  %v1945 = vmul.f32 %v1525, %v1913
  %v1946 = vmul.f32 %v1526, %v1914
  %v1947 = vmul.f32 %v1527, %v1915
  %v1948 = vmul.f32 %v1528, %v1916
  %v1949 = vmul.f32 %v1529, %v1917
  %v1950 = vmul.f32 %v1530, %v1918
  %v1951 = vmul.f32 %v1531, %v1919
  %v1952 = vmul.f32 %v1532, %v1920
  %v1953 = vmul.f32 %v1533, %v1921
  %v1954 = vmul.f32 %v1534, %v1922
  %v1955 = vmul.f32 %v1535, %v1923
  %v1956 = vmul.f32 %v1536, %v1924
  %v1957 = vmul.f32 %v1537, %v1925
  %v1958 = vmul.f32 %v1538, %v1926
  %v1959 = vmul.f32 %v1539, %v1927
  %v1960 = vmul.f32 %v1540, %v1928
  %v1961 = vmul.f32 %v1541, %v1929
  %v1962 = vmul.f32 %v1542, %v1930
  %v1963 = vmul.f32 %v1543, %v1931
  %v1964 = vmul.f32 %v1544, %v1932
  %v1965 = vmul.f32 %v1545, %v1933
  %v1966 = vmul.f32 %v1546, %v1934
  %v1967 = vmul.f32 %v1547, %v1935
  %v1968 = vmul.f32 %v1548, %v1936
  %v1969 = vpack.c.bf16 %v1939, %v1937
  %v1970 = vpack.c.bf16 %v1940, %v1938
  %v1971 = vpack.c.bf16 %v1943, %v1941
  %v1972 = vpack.c.bf16 %v1944, %v1942
  %v1973 = vpack.c.bf16 %v1947, %v1945
  %v1974 = vpack.c.bf16 %v1948, %v1946
  %v1975 = vpack.c.bf16 %v1951, %v1949
  %v1976 = vpack.c.bf16 %v1952, %v1950
  %v1977 = vpack.c.bf16 %v1955, %v1953
  %v1978 = vpack.c.bf16 %v1956, %v1954
  %v1979 = vpack.c.bf16 %v1959, %v1957
  %v1980 = vpack.c.bf16 %v1960, %v1958
  %v1981 = vpack.c.bf16 %v1963, %v1961
  %v1982 = vpack.c.bf16 %v1964, %v1962
  %v1983 = vpack.c.bf16 %v1967, %v1965
  %v1984 = vpack.c.bf16 %v1968, %v1966
  %v1985 = vld [vmem:[%s6] sm:$0xf]
  %v1986 = vld [vmem:[%s6 + $0x4] sm:$0xf]
  %v1987 = vld [vmem:[%s6 + $0x8] sm:$0xf]
  %v1988 = vld [vmem:[%s6 + $0xc] sm:$0xf]
  %v1989 = vld [vmem:[%s6 + $0x10] sm:$0xf]
  %v1990 = vld [vmem:[%s6 + $0x14] sm:$0xf]
  %v1991 = vld [vmem:[%s6 + $0x18] sm:$0xf]
  %v1992 = vld [vmem:[%s6 + $0x1c] sm:$0xf]
  %v1993 = vld [vmem:[%s6 + $0x20] sm:$0xf]
  %v1994 = vld [vmem:[%s6 + $0x24] sm:$0xf]
  %v1995 = vld [vmem:[%s6 + $0x28] sm:$0xf]
  %v1996 = vld [vmem:[%s6 + $0x2c] sm:$0xf]
  %v1997 = vld [vmem:[%s6 + $0x30] sm:$0xf]
  %v1998 = vld [vmem:[%s6 + $0x34] sm:$0xf]
  %v1999 = vld [vmem:[%s6 + $0x38] sm:$0xf]
  %v2000 = vld [vmem:[%s6 + $0x3c] sm:$0xf]
  %v2001 = vld [vmem:[%s6 + $0x40] sm:$0xf]
  %v2002 = vld [vmem:[%s6 + $0x44] sm:$0xf]
  %v2003 = vld [vmem:[%s6 + $0x48] sm:$0xf]
  %v2004 = vld [vmem:[%s6 + $0x4c] sm:$0xf]
  %v2005 = vld [vmem:[%s6 + $0x50] sm:$0xf]
  %v2006 = vld [vmem:[%s6 + $0x54] sm:$0xf]
  %v2007 = vld [vmem:[%s6 + $0x58] sm:$0xf]
  %v2008 = vld [vmem:[%s6 + $0x5c] sm:$0xf]
  %v2009 = vld [vmem:[%s6 + $0x60] sm:$0xf]
  %v2010 = vld [vmem:[%s6 + $0x64] sm:$0xf]
  %v2011 = vld [vmem:[%s6 + $0x68] sm:$0xf]
  %v2012 = vld [vmem:[%s6 + $0x6c] sm:$0xf]
  %v2013 = vld [vmem:[%s6 + $0x70] sm:$0xf]
  %v2014 = vld [vmem:[%s6 + $0x74] sm:$0xf]
  %v2015 = vld [vmem:[%s6 + $0x78] sm:$0xf]
  %v2016 = vld [vmem:[%s6 + $0x7c] sm:$0xf]
  %v2049 = vunpack.c.l.b16 %v1985
  %v2050 = vunpack.c.l.b16 %v1986
  %v2051 = vunpack.c.l.b16 %v1987
  %v2052 = vunpack.c.l.b16 %v1988
  %v2053 = vunpack.c.l.b16 %v1989
  %v2054 = vunpack.c.l.b16 %v1990
  %v2055 = vunpack.c.l.b16 %v1991
  %v2056 = vunpack.c.l.b16 %v1992
  %v2057 = vunpack.c.l.b16 %v1993
  %v2058 = vunpack.c.l.b16 %v1994
  %v2059 = vunpack.c.l.b16 %v1995
  %v2060 = vunpack.c.l.b16 %v1996
  %v2061 = vunpack.c.l.b16 %v1997
  %v2062 = vunpack.c.l.b16 %v1998
  %v2063 = vunpack.c.l.b16 %v1999
  %v2064 = vunpack.c.l.b16 %v2000
  %v2065 = vunpack.c.l.b16 %v2001
  %v2066 = vunpack.c.l.b16 %v2002
  %v2067 = vunpack.c.l.b16 %v2003
  %v2068 = vunpack.c.l.b16 %v2004
  %v2069 = vunpack.c.l.b16 %v2005
  %v2070 = vunpack.c.l.b16 %v2006
  %v2071 = vunpack.c.l.b16 %v2007
  %v2072 = vunpack.c.l.b16 %v2008
  %v2073 = vunpack.c.l.b16 %v2009
  %v2074 = vunpack.c.l.b16 %v2010
  %v2075 = vunpack.c.l.b16 %v2011
  %v2076 = vunpack.c.l.b16 %v2012
  %v2077 = vunpack.c.l.b16 %v2013
  %v2078 = vunpack.c.l.b16 %v2014
  %v2079 = vunpack.c.l.b16 %v2015
  %v2080 = vunpack.c.l.b16 %v2016
  %v2081 = vpack.c.b16 %v2050, %v2049
  %v2082 = vpack.c.b16 %v2052, %v2051
  %v2083 = vpack.c.b16 %v2054, %v2053
  %v2084 = vpack.c.b16 %v2056, %v2055
  %v2085 = vpack.c.b16 %v2058, %v2057
  %v2086 = vpack.c.b16 %v2060, %v2059
  %v2087 = vpack.c.b16 %v2062, %v2061
  %v2088 = vpack.c.b16 %v2064, %v2063
  %v2089 = vpack.c.b16 %v2066, %v2065
  %v2090 = vpack.c.b16 %v2068, %v2067
  %v2091 = vpack.c.b16 %v2070, %v2069
  %v2092 = vpack.c.b16 %v2072, %v2071
  %v2093 = vpack.c.b16 %v2074, %v2073
  %v2094 = vpack.c.b16 %v2076, %v2075
  %v2095 = vpack.c.b16 %v2078, %v2077
  %v2096 = vpack.c.b16 %v2080, %v2079
  %2113 = vmatpush.bf16.msra.mxu0 %v2088
  %2114 = vmatpush.bf16.msra.mxu0 %v2087
  %2115 = vmatpush.bf16.msra.mxu0 %v2086
  %2116 = vmatpush.bf16.msra.mxu0 %v2085
  %2117 = vmatpush.bf16.msra.mxu0 %v2084
  %2118 = vmatpush.bf16.msra.mxu0 %v2083
  %2119 = vmatpush.bf16.msra.mxu0 %v2082
  %2120 = vmatpush.bf16.msra.mxu0 %v2081
  %2121 = vmatmul.bf16.gmra.mxu0 %v1969
  %v2122 = vpop.f32.mrf.mxu0
  %v2123 = vadd.f32 0.0, %v2122
  %v2124 = vpop.f32.mrf.mxu0
  %v2125 = vadd.f32 0.0, %v2124
  %2126 = vmatmul.bf16.gmra.mxu0 %v1971
  %v2127 = vpop.f32.mrf.mxu0
  %v2128 = vadd.f32 0.0, %v2127
  %v2129 = vpop.f32.mrf.mxu0
  %v2130 = vadd.f32 0.0, %v2129
  %2131 = vmatmul.bf16.gmra.mxu0 %v1973
  %v2132 = vpop.f32.mrf.mxu0
  %v2133 = vadd.f32 0.0, %v2132
  %v2134 = vpop.f32.mrf.mxu0
  %v2135 = vadd.f32 0.0, %v2134
  %2136 = vmatmul.bf16.gmra.mxu0 %v1975
  %v2137 = vpop.f32.mrf.mxu0
  %v2138 = vadd.f32 0.0, %v2137
  %v2139 = vpop.f32.mrf.mxu0
  %v2140 = vadd.f32 0.0, %v2139
  %2141 = vmatmul.bf16.gmra.mxu0 %v1977
  %v2142 = vpop.f32.mrf.mxu0
  %v2143 = vadd.f32 0.0, %v2142
  %v2144 = vpop.f32.mrf.mxu0
  %v2145 = vadd.f32 0.0, %v2144
  %2146 = vmatmul.bf16.gmra.mxu0 %v1979
  %v2147 = vpop.f32.mrf.mxu0
  %v2148 = vadd.f32 0.0, %v2147
  %v2149 = vpop.f32.mrf.mxu0
  %v2150 = vadd.f32 0.0, %v2149
  %2151 = vmatmul.bf16.gmra.mxu0 %v1981
  %v2152 = vpop.f32.mrf.mxu0
  %v2153 = vadd.f32 0.0, %v2152
  %v2154 = vpop.f32.mrf.mxu0
  %v2155 = vadd.f32 0.0, %v2154
  %2156 = vmatmul.bf16.gmra.mxu0 %v1983
  %v2157 = vpop.f32.mrf.mxu0
  %v2158 = vadd.f32 0.0, %v2157
  %v2159 = vpop.f32.mrf.mxu0
  %v2160 = vadd.f32 0.0, %v2159
  %2161 = vdwg.mxu0
  %2162 = vmatpush.bf16.msra.mxu0 %v2096
  %2163 = vmatpush.bf16.msra.mxu0 %v2095
  %2164 = vmatpush.bf16.msra.mxu0 %v2094
  %2165 = vmatpush.bf16.msra.mxu0 %v2093
  %2166 = vmatpush.bf16.msra.mxu0 %v2092
  %2167 = vmatpush.bf16.msra.mxu0 %v2091
  %2168 = vmatpush.bf16.msra.mxu0 %v2090
  %2169 = vmatpush.bf16.msra.mxu0 %v2089
  %2170 = vmatmul.bf16.gmra.mxu0 %v1970
  %v2171 = vpop.f32.mrf.mxu0
  %v2172 = vadd.f32 %v2123, %v2171
  %v2173 = vpop.f32.mrf.mxu0
  %v2174 = vadd.f32 %v2125, %v2173
  %2175 = vmatmul.bf16.gmra.mxu0 %v1972
  %v2176 = vpop.f32.mrf.mxu0
  %v2177 = vadd.f32 %v2128, %v2176
  %v2178 = vpop.f32.mrf.mxu0
  %v2179 = vadd.f32 %v2130, %v2178
  %2180 = vmatmul.bf16.gmra.mxu0 %v1974
  %v2181 = vpop.f32.mrf.mxu0
  %v2182 = vadd.f32 %v2133, %v2181
  %v2183 = vpop.f32.mrf.mxu0
  %v2184 = vadd.f32 %v2135, %v2183
  %2185 = vmatmul.bf16.gmra.mxu0 %v1976
  %v2186 = vpop.f32.mrf.mxu0
  %v2187 = vadd.f32 %v2138, %v2186
  %v2188 = vpop.f32.mrf.mxu0
  %v2189 = vadd.f32 %v2140, %v2188
  %2190 = vmatmul.bf16.gmra.mxu0 %v1978
  %v2191 = vpop.f32.mrf.mxu0
  %v2192 = vadd.f32 %v2143, %v2191
  %v2193 = vpop.f32.mrf.mxu0
  %v2194 = vadd.f32 %v2145, %v2193
  %2195 = vmatmul.bf16.gmra.mxu0 %v1980
  %v2196 = vpop.f32.mrf.mxu0
  %v2197 = vadd.f32 %v2148, %v2196
  %v2198 = vpop.f32.mrf.mxu0
  %v2199 = vadd.f32 %v2150, %v2198
  %2200 = vmatmul.bf16.gmra.mxu0 %v1982
  %v2201 = vpop.f32.mrf.mxu0
  %v2202 = vadd.f32 %v2153, %v2201
  %v2203 = vpop.f32.mrf.mxu0
  %v2204 = vadd.f32 %v2155, %v2203
  %2205 = vmatmul.bf16.gmra.mxu0 %v1984
  %v2206 = vpop.f32.mrf.mxu0
  %v2207 = vadd.f32 %v2158, %v2206
  %v2208 = vpop.f32.mrf.mxu0
  %v2209 = vadd.f32 %v2160, %v2208
  %2210 = vdwg.mxu0
  %s2211 = sld [smem:[#allocation4]]
  %v2212 = vlaneseq
  %v2213 = vshrl.u32 %v2212, 7
  %v2214 = vadd.s32 %v2213, 8
  %v2215 = vadd.s32 %v2213, 16
  %v2216 = vadd.s32 %v2213, 24
  %v2217 = vstv %s2211
  %v2218 = vadd.s32 %v2217, %v2213
  %v2219 = vadd.s32 %v2217, %v2214
  %v2220 = vadd.s32 %v2217, %v2215
  %v2221 = vadd.s32 %v2217, %v2216
  %v2222 = vld [vmem:[%s3] sm:$0x1]
  %v2223 = vperm.slane %v2222, 0
  %vm2224 = vcmp.eq.s32.totalorder %v2218, %v2223
  %vm2225 = vcmp.eq.s32.totalorder %v2219, %v2223
  %vm2226 = vcmp.eq.s32.totalorder %v2220, %v2223
  %vm2227 = vcmp.eq.s32.totalorder %v2221, %v2223
  %v2228 = vsel %vm2224, 1, 0
  %v2229 = vsel %vm2225, 1, 0
  %v2230 = vsel %vm2226, 1, 0
  %v2231 = vsel %vm2227, 1, 0
  %v2232 = vcvt.s32.f32 %v2228
  %v2233 = vcvt.s32.f32 %v2229
  %v2234 = vcvt.s32.f32 %v2230
  %v2235 = vcvt.s32.f32 %v2231
  %2236 = vmatpush.msra.mxu0 %v2209
  %2237 = vmatpush.msra.mxu0 %v2207
  %2238 = vmatpush.msra.mxu0 %v2204
  %2239 = vmatpush.msra.mxu0 %v2202
  %2240 = vmatpush.msra.mxu0 %v2199
  %2241 = vmatpush.msra.mxu0 %v2197
  %2242 = vmatpush.msra.mxu0 %v2194
  %2243 = vmatpush.msra.mxu0 %v2192
  %2244 = vmatpush.msra.mxu0 %v2189
  %2245 = vmatpush.msra.mxu0 %v2187
  %2246 = vmatpush.msra.mxu0 %v2184
  %2247 = vmatpush.msra.mxu0 %v2182
  %2248 = vmatpush.msra.mxu0 %v2179
  %2249 = vmatpush.msra.mxu0 %v2177
  %2250 = vmatpush.msra.mxu0 %v2174
  %2251 = vmatpush.msra.mxu0 %v2172
  %2252 = vmatmul.f32.gmra.mxu0 %v2232
  %v2253 = vpop.f32.mrf.mxu0
  %v2254 = vadd.f32 0.0, %v2253
  %2255 = vmatmul.f32.gmra.mxu0 %v2233
  %v2256 = vpop.f32.mrf.mxu0
  %v2257 = vadd.f32 0.0, %v2256
  %2258 = vmatmul.f32.gmra.mxu0 %v2234
  %v2259 = vpop.f32.mrf.mxu0
  %v2260 = vadd.f32 0.0, %v2259
  %2261 = vmatmul.f32.gmra.mxu0 %v2235
  %v2262 = vpop.f32.mrf.mxu0
  %v2263 = vadd.f32 0.0, %v2262
  %2264 = vdwg.mxu0
  %s2265 = scalar_lea.vmem [#allocation2], %s2211
  %v2266 = vld [vmem:[%s2265] sm:$0xff]
  %v2267 = vld [vmem:[%s2265 + $0x8] sm:$0xff]
  %v2268 = vld [vmem:[%s2265 + $0x10] sm:$0xff]
  %v2269 = vld [vmem:[%s2265 + $0x18] sm:$0xff]
  %v2270 = vadd.f32 %v2266, %v2254
  %v2271 = vadd.f32 %v2267, %v2257
  %v2272 = vadd.f32 %v2268, %v2260
  %v2273 = vadd.f32 %v2269, %v2263
  %vm2274 = vcmask 64512
  %2275 = vst.msk [vmem:[%s2265] sm:$0xff] %vm2274, %v2270
  %2276 = vst.msk [vmem:[%s2265 + $0x8] sm:$0xff] %vm2274, %v2271
  %2277 = vst.msk [vmem:[%s2265 + $0x10] sm:$0xff] %vm2274, %v2272
  %2278 = vst.msk [vmem:[%s2265 + $0x18] sm:$0xff] %vm2274, %v2273
  // Predicated region
  $region38: #{_conv_block_pallas.1} parent=0 // pred_check
    %p2279 = pneg %p31
  $region39: #{_conv_block_pallas.1} parent=0 // pred_check_branch
    %2281 = sbr.rel (%p2279) target = $region41
  $region40: #{_conv_block_pallas.1} parent=0 // pred_region
    %v2282 = vld [vmem:[#allocation2] sm:$0xff]
    %v2283 = vld [vmem:[#allocation2 + $0x8] sm:$0xff]
    %v2284 = vld [vmem:[#allocation2 + $0x10] sm:$0xff]
    %v2285 = vld [vmem:[#allocation2 + $0x18] sm:$0xff]
    %v2286 = vld [vmem:[%s4] sm:$0xff]
    %v2287 = vld [vmem:[%s4 + $0x8] sm:$0xff]
    %v2288 = vld [vmem:[%s4 + $0x10] sm:$0xff]
    %v2289 = vld [vmem:[%s4 + $0x18] sm:$0xff]
    %2291 = vset.pattern.permute.xlu0 0
    %2292 = vperm.xlu0 %2291, %v2286
    %v2293 = vpop.permute.xlu0 %2292
    %2296 = vset.pattern.permute.xlu0 0
    %2297 = vperm.xlu0 %2296, %v2287
    %v2298 = vpop.permute.xlu0 %2297
    %2301 = vset.pattern.permute.xlu0 0
    %2302 = vperm.xlu0 %2301, %v2288
    %v2303 = vpop.permute.xlu0 %2302
    %2306 = vset.pattern.permute.xlu0 0
    %2307 = vperm.xlu0 %2306, %v2289
    %v2308 = vpop.permute.xlu0 %2307
    %v2310 = vmul.f32 %v2282, %v2293
    %v2311 = vmul.f32 %v2283, %v2298
    %v2312 = vmul.f32 %v2284, %v2303
    %v2313 = vmul.f32 %v2285, %v2308
    %v2314 = vld [vmem:[%s5] sm:$0xff]
    %v2315 = vld [vmem:[%s5 + $0x8] sm:$0xff]
    %v2316 = vld [vmem:[%s5 + $0x10] sm:$0xff]
    %v2317 = vld [vmem:[%s5 + $0x18] sm:$0xff]
    %v2318 = vadd.f32 %v2310, %v2314
    %v2319 = vadd.f32 %v2311, %v2315
    %v2320 = vadd.f32 %v2312, %v2316
    %v2321 = vadd.f32 %v2313, %v2317
    %vm2322 = vcmp.gt.f32.partialorder %v2318, 0.0
    %vm2323 = vcmp.gt.f32.partialorder %v2319, 0.0
    %vm2324 = vcmp.gt.f32.partialorder %v2320, 0.0
    %vm2325 = vcmp.gt.f32.partialorder %v2321, 0.0
    %v2326 = vmin.f32 %v2318, 0.0
    %v2327 = vmin.f32 %v2319, 0.0
    %v2328 = vmin.f32 %v2320, 0.0
    %v2329 = vmin.f32 %v2321, 0.0
    %v2330 = vmul.f32 %v2326, 1.442695
    %v2331 = vpow.pop %v2330
    %v2332 = vmul.f32 %v2327, 1.442695
    %v2333 = vpow.pop %v2332
    %v2334 = vmul.f32 %v2328, 1.442695
    %v2335 = vpow.pop %v2334
    %v2336 = vmul.f32 %v2329, 1.442695
    %v2337 = vpow.pop %v2336
    %v2338 = vsub.f32 %v2331, 1.0
    %v2339 = vsub.f32 %v2333, 1.0
    %v2340 = vsub.f32 %v2335, 1.0
    %v2341 = vsub.f32 %v2337, 1.0
    %v2342 = vsel %vm2322, %v2318, %v2338
    %v2343 = vsel %vm2323, %v2319, %v2339
    %v2344 = vsel %vm2324, %v2320, %v2340
    %v2345 = vsel %vm2325, %v2321, %v2341
    %v2346 = vsel %vm2274, %v2342, 0.0
    %v2347 = vsel %vm2274, %v2343, 0.0
    %v2348 = vadd.f32 %v2346, %v2347
    %v2349 = vsel %vm2274, %v2344, 0.0
    %v2350 = vadd.f32 %v2348, %v2349
    %v2351 = vsel %vm2274, %v2345, 0.0
    %v2352 = vadd.f32 %v2350, %v2351
    %v2353 = vrot.slane %v2352, 4
    %v2354 = vadd.f32 %v2352, %v2353
    %v2355 = vrot.slane %v2354, 2
    %v2356 = vadd.f32 %v2354, %v2355
    %v2357 = vrot.slane %v2356, 1
    %v2358 = vadd.f32 %v2356, %v2357
    %v2359 = vrcp.pop 32.0
    %v2360 = vmul.f32 32.0, %v2359
    %v2361 = vsub.f32 1.0, %v2360
    %v2362 = vmul.f32 %v2359, %v2361
    %v2363 = vadd.f32 %v2359, %v2362
    %vm2364 = vweird.f32 %v2359
    %v2365 = vsel %vm2364, %v2359, %v2363
    %v2366 = vmul.f32 %v2358, %v2365
    %v2367 = vsub.f32 %v2342, %v2366
    %v2368 = vsub.f32 %v2343, %v2366
    %v2369 = vsub.f32 %v2344, %v2366
    %v2370 = vsub.f32 %v2345, %v2366
    %v2371 = vmul.f32 %v2367, %v2367
    %v2372 = vmul.f32 %v2368, %v2368
    %v2373 = vmul.f32 %v2369, %v2369
    %v2374 = vmul.f32 %v2370, %v2370
    %v2375 = vsel %vm2274, %v2371, 0.0
    %v2376 = vsel %vm2274, %v2372, 0.0
    %v2377 = vadd.f32 %v2375, %v2376
    %v2378 = vsel %vm2274, %v2373, 0.0
    %v2379 = vadd.f32 %v2377, %v2378
    %v2380 = vsel %vm2274, %v2374, 0.0
    %v2381 = vadd.f32 %v2379, %v2380
    %v2382 = vrot.slane %v2381, 4
    %v2383 = vadd.f32 %v2381, %v2382
    %v2384 = vrot.slane %v2383, 2
    %v2385 = vadd.f32 %v2383, %v2384
    %v2386 = vrot.slane %v2385, 1
    %v2387 = vadd.f32 %v2385, %v2386
    %v2388 = vmul.f32 %v2387, %v2365
    %v2389 = vadd.f32 %v2388, 1e-05
    %v2390 = vrsqrt.pop %v2389
    %v2391 = vmul.f32 %v2390, %v2389
    %v2392 = vmul.f32 %v2391, %v2390
    %v2393 = vmul.f32 0.5, %v2392
    %v2394 = vsub.f32 1.5, %v2393
    %v2395 = vmul.f32 %v2390, %v2394
    %vm2396 = vweird.f32 %v2389
    %vm2397 = vweird.f32 %v2390
    %vm2398 = vmor %vm2396, %vm2397
    %v2399 = vsel %vm2398, %v2390, %v2395
    %v2400 = vmul.f32 %v2367, %v2399
    %v2401 = vmul.f32 %v2368, %v2399
    %v2402 = vmul.f32 %v2369, %v2399
    %v2403 = vmul.f32 %v2370, %v2399
    %v2404 = vld [vmem:[%s7] sm:$0x1]
    %v2406 = vperm.slane %v2404, 0
    %v2408 = vmul.f32 %v2400, %v2406
    %v2409 = vmul.f32 %v2401, %v2406
    %v2410 = vmul.f32 %v2402, %v2406
    %v2411 = vmul.f32 %v2403, %v2406
    %v2412 = vld [vmem:[%s8] sm:$0x1]
    %v2414 = vperm.slane %v2412, 0
    %v2416 = vadd.f32 %v2408, %v2414
    %v2417 = vadd.f32 %v2409, %v2414
    %v2418 = vadd.f32 %v2410, %v2414
    %v2419 = vadd.f32 %v2411, %v2414
    %2420 = vst.msk [vmem:[%s9] sm:$0xff] %vm2274, %v2416
    %2421 = vst.msk [vmem:[%s9 + $0x8] sm:$0xff] %vm2274, %v2417
    %2422 = vst.msk [vmem:[%s9 + $0x10] sm:$0xff] %vm2274, %v2418
    %2423 = vst.msk [vmem:[%s9 + $0x18] sm:$0xff] %vm2274, %v2419
  $region41: #{_conv_block_pallas.1} parent=0 // pred_fallthru
    _
  // Predicated region
  $region42: #{_conv_block_pallas.1} parent=0 // pred_check
    _
  $region43: #{_conv_block_pallas.1} parent=0 // pred_check_branch
    %2425 = sbr.rel (0) target = $region45
  $region44: #{_conv_block_pallas.1} parent=0 // pred_region
    _
  $region45: #{_conv_block_pallas.1} parent=0 // pred_fallthru
    _
  // Predicated region
  $region46: #{_conv_block_pallas.1} parent=0 // pred_check
    _
  $region47: #{_conv_block_pallas.1} parent=0 // pred_check_branch
    %2427 = sbr.rel (0) target = $region49
  $region48: #{_conv_block_pallas.1} parent=0 // pred_region
    _
  $region49: #{_conv_block_pallas.1} parent=0 // pred_fallthru
    _

</llo_original>
